<compile_context>
chip_gen: v7x
topology: tpu7x:2x2x1
jax: 0.10.0
libtpu: 0.0.40
codegen_flags: <defaults>
</compile_context>

<pallas_src>
import functools
import math

import jax
import jax.numpy as jnp
from jax import lax
from jax.experimental import pallas as pl
from jax.experimental.pallas import tpu as pltpu


# ------------------------------ Fused MHA kernel ---------------------------- #

def _mha_fused_kernel(q_ref, k_ref, v_ref,
                      wq_ref, bq_ref, wk_ref, bk_ref, wp_ref, bp_ref,
                      o_ref, y_ref, *, n_heads, scale):
    """One (batch, q-block) tile per grid step.  Everything resident in VMEM.

    Activations / weights arrive as bf16; all matmuls accumulate in f32; all
    element-wise math (bias, scale, softmax) is f32.
    """
    _, TQ, E = q_ref.shape          # q block: (1, TQ, E)
    _, S, _ = k_ref.shape           # k/v blocks: (1, S, E)
    D = E // n_heads
    inv_scale = 1.0 / scale
    bf16 = jnp.bfloat16
    # contract on the last (D) axis of both operands -> no k transpose in-kernel
    dn = (((1,), (1,)), ((), ()))

    # Fused projections (bf16 operands -> f32 MXU accumulation).
    # 1/scale is folded into q2 (E mults per row instead of S per score row).
    q2 = (jnp.dot(q_ref[0], wq_ref[...], preferred_element_type=jnp.float32)
          + bq_ref[...]) * inv_scale                                    # (TQ, E) f32
    k2 = (jnp.dot(k_ref[0], wk_ref[...], preferred_element_type=jnp.float32)
          + bk_ref[...])                                                # (S, E)  f32
    # Faithful to the PyTorch module: v is projected with w_k (not w_v).
    v2 = (jnp.dot(v_ref[0], wk_ref[...], preferred_element_type=jnp.float32)
          + bk_ref[...])                                                # (S, E)  f32

    # Cast once for the attention matmuls (bf16 MXU operands).
    q2b = q2.astype(bf16)
    k2b = k2.astype(bf16)
    v2b = v2.astype(bf16)

    # Per-head attention; each head writes its disjoint column slice of the
    # (TQ, E) scratch so no (TQ, H, D) transpose/concat is ever materialized.
    for h in range(n_heads):                       # static unroll (H is small)
        sl = slice(h * D, (h + 1) * D)
        s = lax.dot_general(q2b[:, sl], k2b[:, sl], dn,
                            preferred_element_type=jnp.float32)         # (TQ, S) f32
        s = s - jnp.max(s, axis=-1, keepdims=True)                      # stable softmax
        p = jnp.exp(s)
        l = jnp.sum(p, axis=-1, keepdims=True)                          # (TQ, 1) f32
        yh = jnp.dot(p.astype(bf16), v2b[:, sl],
                     preferred_element_type=jnp.float32)                # (TQ, D) f32
        # Normalize AFTER the PV matmul: scales (TQ, D) instead of (TQ, S).
        y_ref[:, sl] = yh * pl.reciprocal(l, approx=True)

    # Single full-depth (K = E) output projection on the MXU.
    out = (jnp.dot(y_ref[...].astype(bf16), wp_ref[...],
                   preferred_element_type=jnp.float32) + bp_ref[...])   # (TQ, E) f32
    o_ref[0] = out.astype(o_ref.dtype)


def multi_head_attention(q, k, v, params, n_heads, *, q_block=256):
    B, S, E = q.shape
    D = E // n_heads
    scale = math.sqrt(D)
    out_dtype = q.dtype

    TQ = min(q_block, S)            # flash-style q-block; degenerates to S at toy size
    assert S % TQ == 0, "sequence length must be a multiple of the q-block"
    nq = S // TQ

    bf16 = jnp.bfloat16
    # bf16 MXU operands (activations + weights); biases stay f32 for the f32 adds.
    qb, kb, vb = (x.astype(bf16) for x in (q, k, v))
    wq = params["wq"].astype(bf16)
    wk = params["wk"].astype(bf16)
    wp = params["wp"].astype(bf16)
    bq = params["bq"].reshape(1, E).astype(jnp.float32)
    bk = params["bk"].reshape(1, E).astype(jnp.float32)
    bp = params["bp"].reshape(1, E).astype(jnp.float32)

    q_spec = pl.BlockSpec((1, TQ, E), lambda b, qi: (b, qi, 0))
    kv_spec = pl.BlockSpec((1, S, E), lambda b, qi: (b, 0, 0))
    # Constant index_maps -> weights/biases stay resident; single-buffer them
    # (default double-buffering would just waste VMEM on never-changing blocks).
    w_spec = pl.BlockSpec((E, E), lambda b, qi: (0, 0), pipeline_mode=pl.Buffered(1))
    b_spec = pl.BlockSpec((1, E), lambda b, qi: (0, 0), pipeline_mode=pl.Buffered(1))
    o_spec = pl.BlockSpec((1, TQ, E), lambda b, qi: (b, qi, 0))

    kernel = functools.partial(_mha_fused_kernel, n_heads=n_heads, scale=scale)
    return pl.pallas_call(
        kernel,
        out_shape=jax.ShapeDtypeStruct((B, S, E), out_dtype),
        grid=(B, nq),
        in_specs=[q_spec, kv_spec, kv_spec,
                  w_spec, b_spec, w_spec, b_spec, w_spec, b_spec],
        out_specs=o_spec,
        scratch_shapes=[pltpu.VMEM((TQ, E), jnp.float32)],   # per-step y = concat_h(y_h)
        compiler_params=pltpu.CompilerParams(
            dimension_semantics=("parallel", "parallel"),     # megacore-friendly
            vmem_limit_bytes=48 * 1024 * 1024),               # headroom under v7x's 64 MiB
    )(qb, kb, vb, wq, bq, wk, bk, wp, bp)


# ------------------------------ Parameters ---------------------------------- #

def init_params(key, n_embd):
    """Deterministic synthetic weights. Stored as (in, out) so y = x @ W + b."""
    ks = jax.random.split(key, 8)
    scale = 0.02

    def lin(kw, kb):
        w = scale * jax.random.normal(kw, (n_embd, n_embd), jnp.float32)
        b = scale * jax.random.normal(kb, (n_embd,), jnp.float32)
        return w, b

    wq, bq = lin(ks[0], ks[1])
    wk, bk = lin(ks[2], ks[3])
    wv, bv = lin(ks[4], ks[5])      # defined (like nn.Linear w_v) but unused in forward
    wp, bp = lin(ks[6], ks[7])
    return dict(wq=wq, bq=bq, wk=wk, bk=bk, wv=wv, bv=bv, wp=wp, bp=bp)


# ------------------------------ Pure-JAX reference --------------------------- #

def reference(q, k, v, params, n_heads):
    B, S, E = q.shape
    D = E // n_heads
    scale = math.sqrt(D)
    q2 = q @ params["wq"] + params["bq"]
    k2 = k @ params["wk"] + params["bk"]
    v2 = v @ params["wk"] + params["bk"]          # same w_k "bug" as the module

    def heads(x):
        return x.reshape(B, S, n_heads, D).transpose(0, 2, 1, 3)

    qh, kh, vh = heads(q2), heads(k2), heads(v2)
    s = jnp.einsum("bhqd,bhkd->bhqk", qh, kh) / scale
    att = jax.nn.softmax(s, axis=-1)
    y = jnp.einsum("bhqk,bhkd->bhqd", att, vh)
    y = y.transpose(0, 2, 1, 3).reshape(B, S, E)
    return y @ params["wp"] + params["bp"]


# ----------------------------------- main ----------------------------------- #

if __name__ == "__main__":
    B, S, E, H = 2, 8, 32, 4          # small GPTConfig-like shapes (n_embd=32, n_head=4)
    key = jax.random.PRNGKey(0)
    kq, kk, kv, kp = jax.random.split(key, 4)
    q = jax.random.normal(kq, (B, S, E), jnp.float32)
    k = jax.random.normal(kk, (B, S, E), jnp.float32)
    v = jax.random.normal(kv, (B, S, E), jnp.float32)
    params = init_params(kp, E)

    out = multi_head_attention(q, k, v, params, H)
    out = jax.block_until_ready(out)

    ref = reference(q, k, v, params, H)
    assert out.shape == (B, S, E)
    # bf16 matmul operands + approx-reciprocal softmax denom vs f32 reference:
    # observed error is O(1e-3); 1e-2 tolerance keeps a safe margin.
    assert jnp.allclose(out, ref, atol=1e-2, rtol=1e-2), "mismatch vs pure-JAX reference"

    print("KERNEL_OK")
</pallas_src>

<mosaic_0001>
module attributes {stable_mosaic.version = 11 : i64} {
  func.func @_mha_fused_kernel(%arg0: i32, %arg1: i32, %arg2: memref<1x8x32xbf16, #tpu.memory_space<vmem>>, %arg3: memref<1x8x32xbf16, #tpu.memory_space<vmem>>, %arg4: memref<1x8x32xbf16, #tpu.memory_space<vmem>>, %arg5: memref<32x32xbf16, #tpu.memory_space<vmem>>, %arg6: memref<1x32xf32, #tpu.memory_space<vmem>>, %arg7: memref<32x32xbf16, #tpu.memory_space<vmem>>, %arg8: memref<1x32xf32, #tpu.memory_space<vmem>>, %arg9: memref<32x32xbf16, #tpu.memory_space<vmem>>, %arg10: memref<1x32xf32, #tpu.memory_space<vmem>>, %arg11: memref<1x8x32xf32, #tpu.memory_space<vmem>>, %arg12: memref<8x32xf32, #tpu.memory_space<vmem>>) attributes {dimension_semantics = [#tpu.dimension_semantics<parallel>, #tpu.dimension_semantics<parallel>], iteration_bounds = array<i64: 2, 1>, scalar_prefetch = 0 : i64, scratch_operands = 1 : i64, tpu.core_type = #tpu.core_type<tc>, window_params = [{transform_indices = @transform_0, window_bounds = array<i64: 1, 8, 32>}, {transform_indices = @transform_1, window_bounds = array<i64: 1, 8, 32>}, {transform_indices = @transform_2, window_bounds = array<i64: 1, 8, 32>}, {pipeline_mode = #tpu.pipeline_mode<synchronous>, transform_indices = @transform_3, window_bounds = array<i64: 32, 32>}, {pipeline_mode = #tpu.pipeline_mode<synchronous>, transform_indices = @transform_4, window_bounds = array<i64: 1, 32>}, {pipeline_mode = #tpu.pipeline_mode<synchronous>, transform_indices = @transform_5, window_bounds = array<i64: 32, 32>}, {pipeline_mode = #tpu.pipeline_mode<synchronous>, transform_indices = @transform_6, window_bounds = array<i64: 1, 32>}, {pipeline_mode = #tpu.pipeline_mode<synchronous>, transform_indices = @transform_7, window_bounds = array<i64: 32, 32>}, {pipeline_mode = #tpu.pipeline_mode<synchronous>, transform_indices = @transform_8, window_bounds = array<i64: 1, 32>}, {transform_indices = @transform_9, window_bounds = array<i64: 1, 8, 32>}]} {
    %c0 = arith.constant 0 : index
    %c0_0 = arith.constant 0 : index
    %c0_1 = arith.constant 0 : index
    %0 = vector.load %arg2[%c0, %c0_0, %c0_1] : memref<1x8x32xbf16, #tpu.memory_space<vmem>>, vector<1x8x32xbf16>
    %1 = vector.shape_cast %0 : vector<1x8x32xbf16> to vector<8x32xbf16>
    %c0_2 = arith.constant 0 : index
    %c0_3 = arith.constant 0 : index
    %2 = vector.load %arg5[%c0_2, %c0_3] : memref<32x32xbf16, #tpu.memory_space<vmem>>, vector<32x32xbf16>
    %cst = arith.constant dense<0.000000e+00> : vector<8x32xf32>
    %3 = tpu.matmul %1, %2, %cst {dimension_numbers = #tpu.dot_dimension_numbers<[1], [0], [0], [1], [0, 0, 1, 1], [], []>} : vector<8x32xbf16>, vector<32x32xbf16>, vector<8x32xf32> -> vector<8x32xf32>
    %c0_4 = arith.constant 0 : index
    %c0_5 = arith.constant 0 : index
    %4 = vector.load %arg6[%c0_4, %c0_5] : memref<1x32xf32, #tpu.memory_space<vmem>>, vector<1x32xf32>
    %5 = vector.broadcast %4 : vector<1x32xf32> to vector<8x32xf32>
    %6 = arith.addf %3, %5 : vector<8x32xf32>
    %cst_6 = arith.constant 0.353553385 : f32
    %7 = vector.broadcast %cst_6 : f32 to vector<8x32xf32>
    %8 = arith.mulf %6, %7 : vector<8x32xf32>
    %c0_7 = arith.constant 0 : index
    %c0_8 = arith.constant 0 : index
    %c0_9 = arith.constant 0 : index
    %9 = vector.load %arg3[%c0_7, %c0_8, %c0_9] : memref<1x8x32xbf16, #tpu.memory_space<vmem>>, vector<1x8x32xbf16>
    %10 = vector.shape_cast %9 : vector<1x8x32xbf16> to vector<8x32xbf16>
    %c0_10 = arith.constant 0 : index
    %c0_11 = arith.constant 0 : index
    %11 = vector.load %arg7[%c0_10, %c0_11] : memref<32x32xbf16, #tpu.memory_space<vmem>>, vector<32x32xbf16>
    %cst_12 = arith.constant dense<0.000000e+00> : vector<8x32xf32>
    %12 = tpu.matmul %10, %11, %cst_12 {dimension_numbers = #tpu.dot_dimension_numbers<[1], [0], [0], [1], [0, 0, 1, 1], [], []>} : vector<8x32xbf16>, vector<32x32xbf16>, vector<8x32xf32> -> vector<8x32xf32>
    %c0_13 = arith.constant 0 : index
    %c0_14 = arith.constant 0 : index
    %13 = vector.load %arg8[%c0_13, %c0_14] : memref<1x32xf32, #tpu.memory_space<vmem>>, vector<1x32xf32>
    %14 = vector.broadcast %13 : vector<1x32xf32> to vector<8x32xf32>
    %15 = arith.addf %12, %14 : vector<8x32xf32>
    %c0_15 = arith.constant 0 : index
    %c0_16 = arith.constant 0 : index
    %c0_17 = arith.constant 0 : index
    %16 = vector.load %arg4[%c0_15, %c0_16, %c0_17] : memref<1x8x32xbf16, #tpu.memory_space<vmem>>, vector<1x8x32xbf16>
    %17 = vector.shape_cast %16 : vector<1x8x32xbf16> to vector<8x32xbf16>
    %c0_18 = arith.constant 0 : index
    %c0_19 = arith.constant 0 : index
    %18 = vector.load %arg7[%c0_18, %c0_19] : memref<32x32xbf16, #tpu.memory_space<vmem>>, vector<32x32xbf16>
    %cst_20 = arith.constant dense<0.000000e+00> : vector<8x32xf32>
    %19 = tpu.matmul %17, %18, %cst_20 {dimension_numbers = #tpu.dot_dimension_numbers<[1], [0], [0], [1], [0, 0, 1, 1], [], []>} : vector<8x32xbf16>, vector<32x32xbf16>, vector<8x32xf32> -> vector<8x32xf32>
    %c0_21 = arith.constant 0 : index
    %c0_22 = arith.constant 0 : index
    %20 = vector.load %arg8[%c0_21, %c0_22] : memref<1x32xf32, #tpu.memory_space<vmem>>, vector<1x32xf32>
    %21 = vector.broadcast %20 : vector<1x32xf32> to vector<8x32xf32>
    %22 = arith.addf %19, %21 : vector<8x32xf32>
    %23 = arith.truncf %8 : vector<8x32xf32> to vector<8x32xbf16>
    %24 = arith.truncf %15 : vector<8x32xf32> to vector<8x32xbf16>
    %25 = arith.truncf %22 : vector<8x32xf32> to vector<8x32xbf16>
    %26 = vector.extract_strided_slice %23 {offsets = [0, 0], sizes = [8, 8], strides = [1, 1]} : vector<8x32xbf16> to vector<8x8xbf16>
    %27 = vector.extract_strided_slice %24 {offsets = [0, 0], sizes = [8, 8], strides = [1, 1]} : vector<8x32xbf16> to vector<8x8xbf16>
    %cst_23 = arith.constant dense<0.000000e+00> : vector<8x8xf32>
    %28 = tpu.matmul %26, %27, %cst_23 {dimension_numbers = #tpu.dot_dimension_numbers<[1], [1], [0], [0], [0, 0, 1, 0], [], []>} : vector<8x8xbf16>, vector<8x8xbf16>, vector<8x8xf32> -> vector<8x8xf32>
    %cst_24 = arith.constant dense<0xFF800000> : vector<8xf32>
    %29 = vector.multi_reduction <maximumf>, %28, %cst_24 [1] : vector<8x8xf32> to vector<8xf32>
    %30 = vector.shape_cast %29 : vector<8xf32> to vector<8x1xf32>
    %31 = vector.broadcast %30 : vector<8x1xf32> to vector<8x8xf32>
    %32 = arith.subf %28, %31 : vector<8x8xf32>
    %33 = math.exp %32 : vector<8x8xf32>
    %cst_25 = arith.constant dense<0.000000e+00> : vector<8xf32>
    %34 = vector.multi_reduction <add>, %33, %cst_25 [1] : vector<8x8xf32> to vector<8xf32>
    %35 = vector.shape_cast %34 : vector<8xf32> to vector<8x1xf32>
    %36 = arith.truncf %33 : vector<8x8xf32> to vector<8x8xbf16>
    %37 = vector.extract_strided_slice %25 {offsets = [0, 0], sizes = [8, 8], strides = [1, 1]} : vector<8x32xbf16> to vector<8x8xbf16>
    %cst_26 = arith.constant dense<0.000000e+00> : vector<8x8xf32>
    %38 = tpu.matmul %36, %37, %cst_26 {dimension_numbers = #tpu.dot_dimension_numbers<[1], [0], [0], [1], [0, 0, 1, 1], [], []>} : vector<8x8xbf16>, vector<8x8xbf16>, vector<8x8xf32> -> vector<8x8xf32>
    %39 = tpu.reciprocal %35 {approx = true} : vector<8x1xf32> -> vector<8x1xf32>
    %40 = vector.broadcast %39 : vector<8x1xf32> to vector<8x8xf32>
    %41 = arith.mulf %38, %40 : vector<8x8xf32>
    %c0_27 = arith.constant 0 : index
    %c0_28 = arith.constant 0 : index
    %42 = vector.load %arg12[%c0_27, %c0_28] : memref<8x32xf32, #tpu.memory_space<vmem>>, vector<8x8xf32>
    tpu.vector_store %arg12[%c0_27, %c0_28], %41 {strides = array<i32>} : memref<8x32xf32, #tpu.memory_space<vmem>>, vector<8x8xf32>,
    %43 = vector.extract_strided_slice %23 {offsets = [0, 8], sizes = [8, 8], strides = [1, 1]} : vector<8x32xbf16> to vector<8x8xbf16>
    %44 = vector.extract_strided_slice %24 {offsets = [0, 8], sizes = [8, 8], strides = [1, 1]} : vector<8x32xbf16> to vector<8x8xbf16>
    %cst_29 = arith.constant dense<0.000000e+00> : vector<8x8xf32>
    %45 = tpu.matmul %43, %44, %cst_29 {dimension_numbers = #tpu.dot_dimension_numbers<[1], [1], [0], [0], [0, 0, 1, 0], [], []>} : vector<8x8xbf16>, vector<8x8xbf16>, vector<8x8xf32> -> vector<8x8xf32>
    %cst_30 = arith.constant dense<0xFF800000> : vector<8xf32>
    %46 = vector.multi_reduction <maximumf>, %45, %cst_30 [1] : vector<8x8xf32> to vector<8xf32>
    %47 = vector.shape_cast %46 : vector<8xf32> to vector<8x1xf32>
    %48 = vector.broadcast %47 : vector<8x1xf32> to vector<8x8xf32>
    %49 = arith.subf %45, %48 : vector<8x8xf32>
    %50 = math.exp %49 : vector<8x8xf32>
    %cst_31 = arith.constant dense<0.000000e+00> : vector<8xf32>
    %51 = vector.multi_reduction <add>, %50, %cst_31 [1] : vector<8x8xf32> to vector<8xf32>
    %52 = vector.shape_cast %51 : vector<8xf32> to vector<8x1xf32>
    %53 = arith.truncf %50 : vector<8x8xf32> to vector<8x8xbf16>
    %54 = vector.extract_strided_slice %25 {offsets = [0, 8], sizes = [8, 8], strides = [1, 1]} : vector<8x32xbf16> to vector<8x8xbf16>
    %cst_32 = arith.constant dense<0.000000e+00> : vector<8x8xf32>
    %55 = tpu.matmul %53, %54, %cst_32 {dimension_numbers = #tpu.dot_dimension_numbers<[1], [0], [0], [1], [0, 0, 1, 1], [], []>} : vector<8x8xbf16>, vector<8x8xbf16>, vector<8x8xf32> -> vector<8x8xf32>
    %56 = tpu.reciprocal %52 {approx = true} : vector<8x1xf32> -> vector<8x1xf32>
    %57 = vector.broadcast %56 : vector<8x1xf32> to vector<8x8xf32>
    %58 = arith.mulf %55, %57 : vector<8x8xf32>
    %c0_33 = arith.constant 0 : index
    %c8 = arith.constant 8 : index
    %59 = vector.load %arg12[%c0_33, %c8] : memref<8x32xf32, #tpu.memory_space<vmem>>, vector<8x8xf32>
    tpu.vector_store %arg12[%c0_33, %c8], %58 {strides = array<i32>} : memref<8x32xf32, #tpu.memory_space<vmem>>, vector<8x8xf32>,
    %60 = vector.extract_strided_slice %23 {offsets = [0, 16], sizes = [8, 8], strides = [1, 1]} : vector<8x32xbf16> to vector<8x8xbf16>
    %61 = vector.extract_strided_slice %24 {offsets = [0, 16], sizes = [8, 8], strides = [1, 1]} : vector<8x32xbf16> to vector<8x8xbf16>
    %cst_34 = arith.constant dense<0.000000e+00> : vector<8x8xf32>
    %62 = tpu.matmul %60, %61, %cst_34 {dimension_numbers = #tpu.dot_dimension_numbers<[1], [1], [0], [0], [0, 0, 1, 0], [], []>} : vector<8x8xbf16>, vector<8x8xbf16>, vector<8x8xf32> -> vector<8x8xf32>
    %cst_35 = arith.constant dense<0xFF800000> : vector<8xf32>
    %63 = vector.multi_reduction <maximumf>, %62, %cst_35 [1] : vector<8x8xf32> to vector<8xf32>
    %64 = vector.shape_cast %63 : vector<8xf32> to vector<8x1xf32>
    %65 = vector.broadcast %64 : vector<8x1xf32> to vector<8x8xf32>
    %66 = arith.subf %62, %65 : vector<8x8xf32>
    %67 = math.exp %66 : vector<8x8xf32>
    %cst_36 = arith.constant dense<0.000000e+00> : vector<8xf32>
    %68 = vector.multi_reduction <add>, %67, %cst_36 [1] : vector<8x8xf32> to vector<8xf32>
    %69 = vector.shape_cast %68 : vector<8xf32> to vector<8x1xf32>
    %70 = arith.truncf %67 : vector<8x8xf32> to vector<8x8xbf16>
    %71 = vector.extract_strided_slice %25 {offsets = [0, 16], sizes = [8, 8], strides = [1, 1]} : vector<8x32xbf16> to vector<8x8xbf16>
    %cst_37 = arith.constant dense<0.000000e+00> : vector<8x8xf32>
    %72 = tpu.matmul %70, %71, %cst_37 {dimension_numbers = #tpu.dot_dimension_numbers<[1], [0], [0], [1], [0, 0, 1, 1], [], []>} : vector<8x8xbf16>, vector<8x8xbf16>, vector<8x8xf32> -> vector<8x8xf32>
    %73 = tpu.reciprocal %69 {approx = true} : vector<8x1xf32> -> vector<8x1xf32>
    %74 = vector.broadcast %73 : vector<8x1xf32> to vector<8x8xf32>
    %75 = arith.mulf %72, %74 : vector<8x8xf32>
    %c0_38 = arith.constant 0 : index
    %c16 = arith.constant 16 : index
    %76 = vector.load %arg12[%c0_38, %c16] : memref<8x32xf32, #tpu.memory_space<vmem>>, vector<8x8xf32>
    tpu.vector_store %arg12[%c0_38, %c16], %75 {strides = array<i32>} : memref<8x32xf32, #tpu.memory_space<vmem>>, vector<8x8xf32>,
    %77 = vector.extract_strided_slice %23 {offsets = [0, 24], sizes = [8, 8], strides = [1, 1]} : vector<8x32xbf16> to vector<8x8xbf16>
    %78 = vector.extract_strided_slice %24 {offsets = [0, 24], sizes = [8, 8], strides = [1, 1]} : vector<8x32xbf16> to vector<8x8xbf16>
    %cst_39 = arith.constant dense<0.000000e+00> : vector<8x8xf32>
    %79 = tpu.matmul %77, %78, %cst_39 {dimension_numbers = #tpu.dot_dimension_numbers<[1], [1], [0], [0], [0, 0, 1, 0], [], []>} : vector<8x8xbf16>, vector<8x8xbf16>, vector<8x8xf32> -> vector<8x8xf32>
    %cst_40 = arith.constant dense<0xFF800000> : vector<8xf32>
    %80 = vector.multi_reduction <maximumf>, %79, %cst_40 [1] : vector<8x8xf32> to vector<8xf32>
    %81 = vector.shape_cast %80 : vector<8xf32> to vector<8x1xf32>
    %82 = vector.broadcast %81 : vector<8x1xf32> to vector<8x8xf32>
    %83 = arith.subf %79, %82 : vector<8x8xf32>
    %84 = math.exp %83 : vector<8x8xf32>
    %cst_41 = arith.constant dense<0.000000e+00> : vector<8xf32>
    %85 = vector.multi_reduction <add>, %84, %cst_41 [1] : vector<8x8xf32> to vector<8xf32>
    %86 = vector.shape_cast %85 : vector<8xf32> to vector<8x1xf32>
    %87 = arith.truncf %84 : vector<8x8xf32> to vector<8x8xbf16>
    %88 = vector.extract_strided_slice %25 {offsets = [0, 24], sizes = [8, 8], strides = [1, 1]} : vector<8x32xbf16> to vector<8x8xbf16>
    %cst_42 = arith.constant dense<0.000000e+00> : vector<8x8xf32>
    %89 = tpu.matmul %87, %88, %cst_42 {dimension_numbers = #tpu.dot_dimension_numbers<[1], [0], [0], [1], [0, 0, 1, 1], [], []>} : vector<8x8xbf16>, vector<8x8xbf16>, vector<8x8xf32> -> vector<8x8xf32>
    %90 = tpu.reciprocal %86 {approx = true} : vector<8x1xf32> -> vector<8x1xf32>
    %91 = vector.broadcast %90 : vector<8x1xf32> to vector<8x8xf32>
    %92 = arith.mulf %89, %91 : vector<8x8xf32>
    %c0_43 = arith.constant 0 : index
    %c24 = arith.constant 24 : index
    %93 = vector.load %arg12[%c0_43, %c24] : memref<8x32xf32, #tpu.memory_space<vmem>>, vector<8x8xf32>
    tpu.vector_store %arg12[%c0_43, %c24], %92 {strides = array<i32>} : memref<8x32xf32, #tpu.memory_space<vmem>>, vector<8x8xf32>,
    %c0_44 = arith.constant 0 : index
    %c0_45 = arith.constant 0 : index
    %94 = vector.load %arg12[%c0_44, %c0_45] : memref<8x32xf32, #tpu.memory_space<vmem>>, vector<8x32xf32>
    %95 = arith.truncf %94 : vector<8x32xf32> to vector<8x32xbf16>
    %c0_46 = arith.constant 0 : index
    %c0_47 = arith.constant 0 : index
    %96 = vector.load %arg9[%c0_46, %c0_47] : memref<32x32xbf16, #tpu.memory_space<vmem>>, vector<32x32xbf16>
    %cst_48 = arith.constant dense<0.000000e+00> : vector<8x32xf32>
    %97 = tpu.matmul %95, %96, %cst_48 {dimension_numbers = #tpu.dot_dimension_numbers<[1], [0], [0], [1], [0, 0, 1, 1], [], []>} : vector<8x32xbf16>, vector<32x32xbf16>, vector<8x32xf32> -> vector<8x32xf32>
    %c0_49 = arith.constant 0 : index
    %c0_50 = arith.constant 0 : index
    %98 = vector.load %arg10[%c0_49, %c0_50] : memref<1x32xf32, #tpu.memory_space<vmem>>, vector<1x32xf32>
    %99 = vector.broadcast %98 : vector<1x32xf32> to vector<8x32xf32>
    %100 = arith.addf %97, %99 : vector<8x32xf32>
    %c0_51 = arith.constant 0 : index
    %c0_52 = arith.constant 0 : index
    %c0_53 = arith.constant 0 : index
    %101 = vector.load %arg11[%c0_51, %c0_52, %c0_53] : memref<1x8x32xf32, #tpu.memory_space<vmem>>, vector<1x8x32xf32>
    %102 = vector.shape_cast %101 : vector<1x8x32xf32> to vector<8x32xf32>
    %103 = vector.shape_cast %100 : vector<8x32xf32> to vector<1x8x32xf32>
    tpu.vector_store %arg11[%c0_51, %c0_52, %c0_53], %103 {strides = array<i32>} : memref<1x8x32xf32, #tpu.memory_space<vmem>>, vector<1x8x32xf32>,
    return
  }
  func.func @transform_0(%arg0: i32, %arg1: i32) -> (i32, i32, i32) {
    %c0_i32 = arith.constant 0 : i32
    %c0_i32_0 = arith.constant 0 : i32
    return %arg0, %arg1, %c0_i32 : i32, i32, i32
  }
  func.func @transform_1(%arg0: i32, %arg1: i32) -> (i32, i32, i32) {
    %c0_i32 = arith.constant 0 : i32
    %c0_i32_0 = arith.constant 0 : i32
    %c0_i32_1 = arith.constant 0 : i32
    return %arg0, %c0_i32, %c0_i32_0 : i32, i32, i32
  }
  func.func @transform_2(%arg0: i32, %arg1: i32) -> (i32, i32, i32) {
    %c0_i32 = arith.constant 0 : i32
    %c0_i32_0 = arith.constant 0 : i32
    %c0_i32_1 = arith.constant 0 : i32
    return %arg0, %c0_i32, %c0_i32_0 : i32, i32, i32
  }
  func.func @transform_3(%arg0: i32, %arg1: i32) -> (i32, i32) {
    %c0_i32 = arith.constant 0 : i32
    %c0_i32_0 = arith.constant 0 : i32
    %c0_i32_1 = arith.constant 0 : i32
    return %c0_i32, %c0_i32_0 : i32, i32
  }
  func.func @transform_4(%arg0: i32, %arg1: i32) -> (i32, i32) {
    %c0_i32 = arith.constant 0 : i32
    %c0_i32_0 = arith.constant 0 : i32
    %c0_i32_1 = arith.constant 0 : i32
    return %c0_i32, %c0_i32_0 : i32, i32
  }
  func.func @transform_5(%arg0: i32, %arg1: i32) -> (i32, i32) {
    %c0_i32 = arith.constant 0 : i32
    %c0_i32_0 = arith.constant 0 : i32
    %c0_i32_1 = arith.constant 0 : i32
    return %c0_i32, %c0_i32_0 : i32, i32
  }
  func.func @transform_6(%arg0: i32, %arg1: i32) -> (i32, i32) {
    %c0_i32 = arith.constant 0 : i32
    %c0_i32_0 = arith.constant 0 : i32
    %c0_i32_1 = arith.constant 0 : i32
    return %c0_i32, %c0_i32_0 : i32, i32
  }
  func.func @transform_7(%arg0: i32, %arg1: i32) -> (i32, i32) {
    %c0_i32 = arith.constant 0 : i32
    %c0_i32_0 = arith.constant 0 : i32
    %c0_i32_1 = arith.constant 0 : i32
    return %c0_i32, %c0_i32_0 : i32, i32
  }
  func.func @transform_8(%arg0: i32, %arg1: i32) -> (i32, i32) {
    %c0_i32 = arith.constant 0 : i32
    %c0_i32_0 = arith.constant 0 : i32
    %c0_i32_1 = arith.constant 0 : i32
    return %c0_i32, %c0_i32_0 : i32, i32
  }
  func.func @transform_9(%arg0: i32, %arg1: i32) -> (i32, i32, i32) {
    %c0_i32 = arith.constant 0 : i32
    %c0_i32_0 = arith.constant 0 : i32
    return %arg0, %arg1, %c0_i32 : i32, i32, i32
  }
}

</mosaic_0001>

<llo_original>
// kernel: tpu_custom_call.1
$region0: #{tpu_custom_call.1}
  #allocation0 [shape = 'u32[]', space=smem, size = 0x4, offset = 0x4, fixed_abs, tag = 'smem constant byte address 0x4 - core index']
  #allocation1 [shape = 'u32[144,128]{1,0:T(1,128)}', space=vmem, size = 0x12000, scoped, tag = 'internal scratch']
  #allocation2 [shape = 'f32[8,32]{1,0:T(8,128)}', space=vmem, size = 0x1000, scoped, tag = 'scratch operand']
  %s0 = inlined_call_operand.hbm [shape: bf16[2,8,32], index: 0, kind: input, shape index: {}]
  %s1 = inlined_call_operand.hbm [shape: bf16[2,8,32], index: 1, kind: input, shape index: {}]
  %s2 = inlined_call_operand.hbm [shape: bf16[2,8,32], index: 2, kind: input, shape index: {}]
  %s3 = inlined_call_operand.hbm [shape: bf16[32,32], index: 3, kind: input, shape index: {}]
  %s4 = inlined_call_operand.vmem [shape: f32[1,32], index: 4, kind: input, shape index: {}]
  %s5 = inlined_call_operand.vmem [shape: bf16[32,32], index: 5, kind: input, shape index: {}]
  %s6 = inlined_call_operand.vmem [shape: f32[1,32], index: 6, kind: input, shape index: {}]
  %s7 = inlined_call_operand.hbm [shape: bf16[32,32], index: 7, kind: input, shape index: {}]
  %s8 = inlined_call_operand.vmem [shape: f32[1,32], index: 8, kind: input, shape index: {}]
  %s9 = inlined_call_operand.hbm [shape: f32[2,8,32], index: 9, kind: output, shape index: {}]
  %s10 = sld [smem:[#allocation0]]
  $region89: #{tpu_custom_call.1} parent=0
    _
  %s12 = ssub.s32 1, %s10
  %s13 = scalar_select 0, %s12, %s10
  $region1: #{tpu_custom_call.1} parent=0
    #allocation3 [shape = 'u8[4096]{0}', space=vmem, size = 0x1000, scoped, tag = 'input window, operand 0']
    #allocation4 [shape = 's32[2]{0}', space=sflag, size = 0x8, scoped, tag = 'scoped memory for tpu_custom_call.1']
    #allocation5 [shape = 's32[2]{0}', space=sflag, size = 0x8, scoped, tag = 'scoped memory for tpu_custom_call.1']
    #allocation6 [shape = 'u8[4096]{0}', space=vmem, size = 0x1000, scoped, tag = 'input window, operand 1']
    #allocation7 [shape = 's32[2]{0}', space=sflag, size = 0x8, scoped, tag = 'scoped memory for tpu_custom_call.1']
    #allocation8 [shape = 'u8[4096]{0}', space=vmem, size = 0x1000, scoped, tag = 'input window, operand 2']
    #allocation9 [shape = 'u8[8192]{0}', space=vmem, size = 0x2000, scoped, tag = 'input window, operand 3, single buffered']
    #allocation10 [shape = 's32[1]{0}', space=sflag, size = 0x4, scoped, tag = 'scoped memory for tpu_custom_call.1']
    #allocation11 [shape = 'u8[8192]{0}', space=vmem, size = 0x2000, scoped, tag = 'input window, operand 7, single buffered']
    #allocation12 [shape = 'u8[8192]{0}', space=vmem, size = 0x2000, scoped, tag = 'output window, operand 0']
    %14 = vsyncpa [#allocation4], 0
    %s15 = scalar_lea.sflag [#allocation4], 1
    %16 = vsyncpa %s15, 0
    %17 = vsyncpa [#allocation7], 0
    %s18 = scalar_lea.sflag [#allocation7], 1
    %19 = vsyncpa %s18, 0
    %20 = vsyncpa [#allocation10], 0
    %21 = vsyncpa [#allocation5], 0
    %s22 = scalar_lea.sflag [#allocation5], 1
    %23 = vsyncpa %s22, 0
    loop: start=0, step=1, limit=4
    $region2: #{tpu_custom_call.1} parent=1 // loop_pre_header
      _
    $region3: #{tpu_custom_call.1} parent=1 // loop_header
      %s25 = sphi 0, %s29
      %p26 = scmp.ge.s32.totalorder %s25, 4
      %s32 = sphi 0, %s44
      %s33 = sphi 0, %s40
      %s34 = sphi 0, %s32
      %s35 = sphi 0, %s33
      %s36 = sphi 0, %s34
      %s37 = sphi 0, %s35
      %s49 = sphi 0, %s51
      %s52 = sphi 0, %s49
      %s53 = sphi 0, %s52
      %s69 = sphi 0, %s53
      %s75 = sphi 0, %s77
      %s78 = sphi 0, %s75
      %s79 = sphi 0, %s78
      %s95 = sphi 0, %s79
      %s101 = sphi 0, %s103
      %s104 = sphi 0, %s101
      %s105 = sphi 0, %s104
      %s121 = sphi 0, %s105
      %s125 = sphi 0, %s125
      %s127 = sphi 0, %s125
      %s128 = sphi 0, %s127
      %s142 = sphi 0, %s128
      %s146 = sphi 0, %s146
      %s148 = sphi 0, %s146
      %s149 = sphi 0, %s148
      %s163 = sphi 0, %s149
      %s167 = sphi 0, %s167
      %s169 = sphi 0, %s167
      %s170 = sphi 0, %s169
      %s184 = sphi 0, %s170
      %s188 = sphi 0, %s188
      %s190 = sphi 0, %s188
      %s191 = sphi 0, %s190
      %s205 = sphi 0, %s191
      %s209 = sphi 0, %s209
      %s211 = sphi 0, %s209
      %s212 = sphi 0, %s211
      %s226 = sphi 0, %s212
      %s230 = sphi 0, %s230
      %s232 = sphi 0, %s230
      %s233 = sphi 0, %s232
      %s247 = sphi 0, %s233
      %s255 = sphi 0, %s257
      %s258 = sphi 0, %s255
      %s259 = sphi 0, %s258
      %s275 = sphi 0, %s259
    $region4: #{tpu_custom_call.1} parent=1 // loop_header_branch
      %28 = sbr.rel (%p26) target = $region8
    $region5: #{tpu_custom_call.1} parent=1 // loop_body
      %s30 = ssub.s32 %s25, 1
      %s31 = ssub.s32 %s25, 2
      %s38 = sadd.s32 1, %s33
      %p39 = scmp.ge.s32.totalorder %s38, 1
      %s40 = scalar_select %p39, 0, %s38
      %s41 = sadd.s32 1, %s32
      %s42 = scalar_select %p39, %s41, %s32
      %p43 = scmp.ge.s32.totalorder %s42, 2
      %s44 = scalar_select %p43, 0, %s42
      %s45 = ssub.s32 %s32, %s44
      %s46 = ssub.s32 %s33, %s40
      %s47 = sor.u32 %s45, %s46
      %p48 = scmp.eq.s32.totalorder %s47, 0
      %s50 = sadd.s32 %s49, 1
      %s51 = scalar_select %p48, %s49, %s50
      %p54 = pneg %p48
      %p55 = scmp.eq.s32.totalorder %s25, 1
      %p56 = por %p54, %p55
      %p57 = scmp.ne.s32.totalorder %s49, %s52
      %p58 = scmp.eq.s32.totalorder %s25, 0
      %p59 = por %p57, %p58
      %p60 = scmp.ne.s32.totalorder %s49, %s52
      %p61 = scmp.eq.s32.totalorder %s30, 1
      %p62 = por %p60, %p61
      %p63 = scmp.ne.s32.totalorder %s52, %s53
      %p64 = scmp.eq.s32.totalorder %s30, 0
      %p65 = por %p63, %p64
      %p66 = scmp.ne.s32.totalorder %s52, %s53
      %p67 = scmp.eq.s32.totalorder %s31, 1
      %p68 = por %p66, %p67
      %p70 = scmp.ne.s32.totalorder %s53, %s69
      %p71 = scmp.eq.s32.totalorder %s31, 0
      %p72 = por %p70, %p71
      %s73 = ssub.s32 %s32, %s44
      %p74 = scmp.eq.s32.totalorder %s73, 0
      %s76 = sadd.s32 %s75, 1
      %s77 = scalar_select %p74, %s75, %s76
      %p80 = pneg %p74
      %p81 = scmp.eq.s32.totalorder %s25, 1
      %p82 = por %p80, %p81
      %p83 = scmp.ne.s32.totalorder %s75, %s78
      %p84 = scmp.eq.s32.totalorder %s25, 0
      %p85 = por %p83, %p84
      %p86 = scmp.ne.s32.totalorder %s75, %s78
      %p87 = scmp.eq.s32.totalorder %s30, 1
      %p88 = por %p86, %p87
      %p89 = scmp.ne.s32.totalorder %s78, %s79
      %p90 = scmp.eq.s32.totalorder %s30, 0
      %p91 = por %p89, %p90
      %p92 = scmp.ne.s32.totalorder %s78, %s79
      %p93 = scmp.eq.s32.totalorder %s31, 1
      %p94 = por %p92, %p93
      %p96 = scmp.ne.s32.totalorder %s79, %s95
      %p97 = scmp.eq.s32.totalorder %s31, 0
      %p98 = por %p96, %p97
      %s99 = ssub.s32 %s32, %s44
      %p100 = scmp.eq.s32.totalorder %s99, 0
      %s102 = sadd.s32 %s101, 1
      %s103 = scalar_select %p100, %s101, %s102
      %p106 = pneg %p100
      %p107 = scmp.eq.s32.totalorder %s25, 1
      %p108 = por %p106, %p107
      %p109 = scmp.ne.s32.totalorder %s101, %s104
      %p110 = scmp.eq.s32.totalorder %s25, 0
      %p111 = por %p109, %p110
      %p112 = scmp.ne.s32.totalorder %s101, %s104
      %p113 = scmp.eq.s32.totalorder %s30, 1
      %p114 = por %p112, %p113
      %p115 = scmp.ne.s32.totalorder %s104, %s105
      %p116 = scmp.eq.s32.totalorder %s30, 0
      %p117 = por %p115, %p116
      %p118 = scmp.ne.s32.totalorder %s104, %s105
      %p119 = scmp.eq.s32.totalorder %s31, 1
      %p120 = por %p118, %p119
      %p122 = scmp.ne.s32.totalorder %s105, %s121
      %p123 = scmp.eq.s32.totalorder %s31, 0
      %p124 = por %p122, %p123
      %s126 = sadd.s32 %s125, 1
      %p129 = scmp.eq.s32.totalorder %s25, 1
      %p130 = scmp.ne.s32.totalorder %s125, %s127
      %p131 = scmp.eq.s32.totalorder %s25, 0
      %p132 = por %p130, %p131
      %p133 = scmp.ne.s32.totalorder %s125, %s127
      %p134 = scmp.eq.s32.totalorder %s30, 1
      %p135 = por %p133, %p134
      %p136 = scmp.ne.s32.totalorder %s127, %s128
      %p137 = scmp.eq.s32.totalorder %s30, 0
      %p138 = por %p136, %p137
      %p139 = scmp.ne.s32.totalorder %s127, %s128
      %p140 = scmp.eq.s32.totalorder %s31, 1
      %p141 = por %p139, %p140
      %p143 = scmp.ne.s32.totalorder %s128, %s142
      %p144 = scmp.eq.s32.totalorder %s31, 0
      %p145 = por %p143, %p144
      %s147 = sadd.s32 %s146, 1
      %p150 = scmp.eq.s32.totalorder %s25, 1
      %p151 = scmp.ne.s32.totalorder %s146, %s148
      %p152 = scmp.eq.s32.totalorder %s25, 0
      %p153 = por %p151, %p152
      %p154 = scmp.ne.s32.totalorder %s146, %s148
      %p155 = scmp.eq.s32.totalorder %s30, 1
      %p156 = por %p154, %p155
      %p157 = scmp.ne.s32.totalorder %s148, %s149
      %p158 = scmp.eq.s32.totalorder %s30, 0
      %p159 = por %p157, %p158
      %p160 = scmp.ne.s32.totalorder %s148, %s149
      %p161 = scmp.eq.s32.totalorder %s31, 1
      %p162 = por %p160, %p161
      %p164 = scmp.ne.s32.totalorder %s149, %s163
      %p165 = scmp.eq.s32.totalorder %s31, 0
      %p166 = por %p164, %p165
      %s168 = sadd.s32 %s167, 1
      %p171 = scmp.eq.s32.totalorder %s25, 1
      %p172 = scmp.ne.s32.totalorder %s167, %s169
      %p173 = scmp.eq.s32.totalorder %s25, 0
      %p174 = por %p172, %p173
      %p175 = scmp.ne.s32.totalorder %s167, %s169
      %p176 = scmp.eq.s32.totalorder %s30, 1
      %p177 = por %p175, %p176
      %p178 = scmp.ne.s32.totalorder %s169, %s170
      %p179 = scmp.eq.s32.totalorder %s30, 0
      %p180 = por %p178, %p179
      %p181 = scmp.ne.s32.totalorder %s169, %s170
      %p182 = scmp.eq.s32.totalorder %s31, 1
      %p183 = por %p181, %p182
      %p185 = scmp.ne.s32.totalorder %s170, %s184
      %p186 = scmp.eq.s32.totalorder %s31, 0
      %p187 = por %p185, %p186
      %s189 = sadd.s32 %s188, 1
      %p192 = scmp.eq.s32.totalorder %s25, 1
      %p193 = scmp.ne.s32.totalorder %s188, %s190
      %p194 = scmp.eq.s32.totalorder %s25, 0
      %p195 = por %p193, %p194
      %p196 = scmp.ne.s32.totalorder %s188, %s190
      %p197 = scmp.eq.s32.totalorder %s30, 1
      %p198 = por %p196, %p197
      %p199 = scmp.ne.s32.totalorder %s190, %s191
      %p200 = scmp.eq.s32.totalorder %s30, 0
      %p201 = por %p199, %p200
      %p202 = scmp.ne.s32.totalorder %s190, %s191
      %p203 = scmp.eq.s32.totalorder %s31, 1
      %p204 = por %p202, %p203
      %p206 = scmp.ne.s32.totalorder %s191, %s205
      %p207 = scmp.eq.s32.totalorder %s31, 0
      %p208 = por %p206, %p207
      %s210 = sadd.s32 %s209, 1
      %p213 = scmp.eq.s32.totalorder %s25, 1
      %p214 = scmp.ne.s32.totalorder %s209, %s211
      %p215 = scmp.eq.s32.totalorder %s25, 0
      %p216 = por %p214, %p215
      %p217 = scmp.ne.s32.totalorder %s209, %s211
      %p218 = scmp.eq.s32.totalorder %s30, 1
      %p219 = por %p217, %p218
      %p220 = scmp.ne.s32.totalorder %s211, %s212
      %p221 = scmp.eq.s32.totalorder %s30, 0
      %p222 = por %p220, %p221
      %p223 = scmp.ne.s32.totalorder %s211, %s212
      %p224 = scmp.eq.s32.totalorder %s31, 1
      %p225 = por %p223, %p224
      %p227 = scmp.ne.s32.totalorder %s212, %s226
      %p228 = scmp.eq.s32.totalorder %s31, 0
      %p229 = por %p227, %p228
      %s231 = sadd.s32 %s230, 1
      %p234 = scmp.eq.s32.totalorder %s25, 1
      %p235 = scmp.ne.s32.totalorder %s230, %s232
      %p236 = scmp.eq.s32.totalorder %s25, 0
      %p237 = por %p235, %p236
      %p238 = scmp.ne.s32.totalorder %s230, %s232
      %p239 = scmp.eq.s32.totalorder %s30, 1
      %p240 = por %p238, %p239
      %p241 = scmp.ne.s32.totalorder %s232, %s233
      %p242 = scmp.eq.s32.totalorder %s30, 0
      %p243 = por %p241, %p242
      %p244 = scmp.ne.s32.totalorder %s232, %s233
      %p245 = scmp.eq.s32.totalorder %s31, 1
      %p246 = por %p244, %p245
      %p248 = scmp.ne.s32.totalorder %s233, %s247
      %p249 = scmp.eq.s32.totalorder %s31, 0
      %p250 = por %p248, %p249
      %s251 = ssub.s32 %s32, %s44
      %s252 = ssub.s32 %s33, %s40
      %s253 = sor.u32 %s251, %s252
      %p254 = scmp.eq.s32.totalorder %s253, 0
      %s256 = sadd.s32 %s255, 1
      %s257 = scalar_select %p254, %s255, %s256
      %p260 = pneg %p254
      %p261 = scmp.eq.s32.totalorder %s25, 1
      %p262 = por %p260, %p261
      %p263 = scmp.ne.s32.totalorder %s255, %s258
      %p264 = scmp.eq.s32.totalorder %s25, 0
      %p265 = por %p263, %p264
      %p266 = scmp.ne.s32.totalorder %s255, %s258
      %p267 = scmp.eq.s32.totalorder %s30, 1
      %p268 = por %p266, %p267
      %p269 = scmp.ne.s32.totalorder %s258, %s259
      %p270 = scmp.eq.s32.totalorder %s30, 0
      %p271 = por %p269, %p270
      %p272 = scmp.ne.s32.totalorder %s258, %s259
      %p273 = scmp.eq.s32.totalorder %s31, 1
      %p274 = por %p272, %p273
      %p276 = scmp.ne.s32.totalorder %s259, %s275
      %p277 = scmp.eq.s32.totalorder %s31, 0
      %p278 = por %p276, %p277
      %p279 = scmp.le.s32.totalorder 1, %s25
      %p280 = scmp.lt.s32.totalorder %s25, 3
      %p281 = pnand %p279, %p280
      %p282 = pneg %p281
      // Predicated region
      $region9: #{tpu_custom_call.1} parent=5 // pred_check
        _
      $region10: #{tpu_custom_call.1} parent=5 // pred_check_branch
        %284 = sbr.rel (%p281) target = $region12
      $region11: #{tpu_custom_call.1} parent=5 // pred_region
        %s285 = ssub.s32 %s25, 1
        // Predicated region
        $region13: #{tpu_custom_call.1} parent=11 // pred_check
          %p286 = pneg %p138
        $region14: #{tpu_custom_call.1} parent=11 // pred_check_branch
          %288 = sbr.rel (%p286) target = $region16
        $region15: #{tpu_custom_call.1} parent=11 // pred_region
          %s290 = ssub.s32 256, 256
          %291 = vsyncadd [#allocation10], %s290
          %s292 = sshll.u32 [#allocation9], 4
          %s293 = int_to_ptr.vmem [resolvable:$true] %s292
          %298 = dma.hbm_to_vmem [thread:$0]  %s3, 256, %s293, [#allocation10], 64, 64, 4
        $region16: #{tpu_custom_call.1} parent=11 // pred_fallthru
          _
        // Predicated region
        $region17: #{tpu_custom_call.1} parent=11 // pred_check
          %p299 = pneg %p159
        $region18: #{tpu_custom_call.1} parent=11 // pred_check_branch
          %301 = sbr.rel (%p299) target = $region20
        $region19: #{tpu_custom_call.1} parent=11 // pred_region
          _
        $region20: #{tpu_custom_call.1} parent=11 // pred_fallthru
          _
        // Predicated region
        $region21: #{tpu_custom_call.1} parent=11 // pred_check
          %p302 = pneg %p180
        $region22: #{tpu_custom_call.1} parent=11 // pred_check_branch
          %304 = sbr.rel (%p302) target = $region24
        $region23: #{tpu_custom_call.1} parent=11 // pred_region
          _
        $region24: #{tpu_custom_call.1} parent=11 // pred_fallthru
          _
        // Predicated region
        $region25: #{tpu_custom_call.1} parent=11 // pred_check
          %p305 = pneg %p201
        $region26: #{tpu_custom_call.1} parent=11 // pred_check_branch
          %307 = sbr.rel (%p305) target = $region28
        $region27: #{tpu_custom_call.1} parent=11 // pred_region
          _
        $region28: #{tpu_custom_call.1} parent=11 // pred_fallthru
          _
        // Predicated region
        $region29: #{tpu_custom_call.1} parent=11 // pred_check
          %p308 = pneg %p222
        $region30: #{tpu_custom_call.1} parent=11 // pred_check_branch
          %310 = sbr.rel (%p308) target = $region32
        $region31: #{tpu_custom_call.1} parent=11 // pred_region
          %s312 = ssub.s32 256, 256
          %313 = vsyncadd [#allocation10], %s312
          %s314 = sshll.u32 [#allocation11], 4
          %s315 = int_to_ptr.vmem [resolvable:$true] %s314
          %320 = dma.hbm_to_vmem [thread:$0]  %s7, 256, %s315, [#allocation10], 64, 64, 4
        $region32: #{tpu_custom_call.1} parent=11 // pred_fallthru
          _
        // Predicated region
        $region33: #{tpu_custom_call.1} parent=11 // pred_check
          %p321 = pneg %p243
        $region34: #{tpu_custom_call.1} parent=11 // pred_check_branch
          %323 = sbr.rel (%p321) target = $region36
        $region35: #{tpu_custom_call.1} parent=11 // pred_region
          _
        $region36: #{tpu_custom_call.1} parent=11 // pred_fallthru
          _
      $region12: #{tpu_custom_call.1} parent=5 // pred_fallthru
        _
      %p324 = scmp.lt.s32.totalorder %s25, 2
      // Predicated region
      $region37: #{tpu_custom_call.1} parent=5 // pred_check
        %p325 = pneg %p324
      $region38: #{tpu_custom_call.1} parent=5 // pred_check_branch
        %327 = sbr.rel (%p325) target = $region40
      $region39: #{tpu_custom_call.1} parent=5 // pred_region
        // Predicated region
        $region41: #{tpu_custom_call.1} parent=39 // pred_check
          %p328 = pneg %p59
        $region42: #{tpu_custom_call.1} parent=39 // pred_check_branch
          %330 = sbr.rel (%p328) target = $region44
        $region43: #{tpu_custom_call.1} parent=39 // pred_region
          %s331 = sand.u32 %s49, 1
          %s332 = scalar_lea.sflag [#allocation4], %s331
          %s333 = sand.u32 %s49, 1
          %s334 = smul.addr %s333, 4
          %s335 = scalar_lea.vmem [#allocation3], %s334
          %s337 = ssub.s32 64, 64
          %338 = vsyncadd %s332, %s337
          %s339 = sadd.s32 %s33, %s32
          %s340 = smul.addr %s339, 64
          %s341 = scalar_lea.hbm %s0, %s340
          %s343 = sshll.u32 %s335, 4
          %s344 = int_to_ptr.vmem [resolvable:$true] %s343
          %346 = dma.hbm_to_vmem [thread:$0]  %s341, 64, %s344, %s332
        $region44: #{tpu_custom_call.1} parent=39 // pred_fallthru
          _
        // Predicated region
        $region45: #{tpu_custom_call.1} parent=39 // pred_check
          %p347 = pneg %p85
        $region46: #{tpu_custom_call.1} parent=39 // pred_check_branch
          %349 = sbr.rel (%p347) target = $region48
        $region47: #{tpu_custom_call.1} parent=39 // pred_region
          %s350 = sand.u32 %s25, 1
          %s351 = scalar_lea.sflag [#allocation7], %s350
          %s352 = sand.u32 %s75, 1
          %s353 = smul.addr %s352, 4
          %s354 = scalar_lea.vmem [#allocation6], %s353
          %s356 = ssub.s32 64, 64
          %357 = vsyncadd %s351, %s356
          %s358 = smul.addr %s32, 64
          %s359 = scalar_lea.hbm %s1, %s358
          %s361 = sshll.u32 %s354, 4
          %s362 = int_to_ptr.vmem [resolvable:$true] %s361
          %364 = dma.hbm_to_vmem [thread:$0]  %s359, 64, %s362, %s351
        $region48: #{tpu_custom_call.1} parent=39 // pred_fallthru
          _
        // Predicated region
        $region49: #{tpu_custom_call.1} parent=39 // pred_check
          %p365 = pneg %p111
        $region50: #{tpu_custom_call.1} parent=39 // pred_check_branch
          %367 = sbr.rel (%p365) target = $region52
        $region51: #{tpu_custom_call.1} parent=39 // pred_region
          %s368 = sand.u32 %s25, 1
          %s369 = scalar_lea.sflag [#allocation7], %s368
          %s370 = sand.u32 %s101, 1
          %s371 = smul.addr %s370, 4
          %s372 = scalar_lea.vmem [#allocation8], %s371
          %s374 = ssub.s32 64, 64
          %375 = vsyncadd %s369, %s374
          %s376 = smul.addr %s32, 64
          %s377 = scalar_lea.hbm %s2, %s376
          %s379 = sshll.u32 %s372, 4
          %s380 = int_to_ptr.vmem [resolvable:$true] %s379
          %382 = dma.hbm_to_vmem [thread:$0]  %s377, 64, %s380, %s369
        $region52: #{tpu_custom_call.1} parent=39 // pred_fallthru
          _
      $region40: #{tpu_custom_call.1} parent=5 // pred_fallthru
        _
      %p383 = scmp.le.s32.totalorder 1, %s25
      %p384 = scmp.lt.s32.totalorder %s25, 3
      %p385 = pnand %p383, %p384
      %p386 = pneg %p385
      // Predicated region
      $region53: #{tpu_custom_call.1} parent=5 // pred_check
        _
      $region54: #{tpu_custom_call.1} parent=5 // pred_check_branch
        %388 = sbr.rel (%p385) target = $region56
      $region55: #{tpu_custom_call.1} parent=5 // pred_region
        %s389 = ssub.s32 %s25, 1
        %s390 = sand.u32 %s52, 1
        %s391 = scalar_lea.sflag [#allocation4], %s390
        %s392 = sand.u32 %s52, 1
        %s393 = smul.addr %s392, 4
        %s394 = scalar_lea.vmem [#allocation3], %s393
        // Predicated region
        $region57: #{tpu_custom_call.1} parent=55 // pred_check
          %p395 = pneg %p65
        $region58: #{tpu_custom_call.1} parent=55 // pred_check_branch
          %397 = sbr.rel (%p395) target = $region60
        $region59: #{tpu_custom_call.1} parent=55 // pred_region
          %398 = dma.done %s391, 64
        $region60: #{tpu_custom_call.1} parent=55 // pred_fallthru
          _
        %s399 = sand.u32 %s30, 1
        %s400 = scalar_lea.sflag [#allocation7], %s399
        %s401 = sand.u32 %s78, 1
        %s402 = smul.addr %s401, 4
        %s403 = scalar_lea.vmem [#allocation6], %s402
        // Predicated region
        $region61: #{tpu_custom_call.1} parent=55 // pred_check
          %p404 = pneg %p91
        $region62: #{tpu_custom_call.1} parent=55 // pred_check_branch
          %406 = sbr.rel (%p404) target = $region64
        $region63: #{tpu_custom_call.1} parent=55 // pred_region
          %407 = dma.done %s400, 64
        $region64: #{tpu_custom_call.1} parent=55 // pred_fallthru
          _
        %s408 = sand.u32 %s30, 1
        %s409 = scalar_lea.sflag [#allocation7], %s408
        %s410 = sand.u32 %s104, 1
        %s411 = smul.addr %s410, 4
        %s412 = scalar_lea.vmem [#allocation8], %s411
        // Predicated region
        $region65: #{tpu_custom_call.1} parent=55 // pred_check
          %p413 = pneg %p117
        $region66: #{tpu_custom_call.1} parent=55 // pred_check_branch
          %415 = sbr.rel (%p413) target = $region68
        $region67: #{tpu_custom_call.1} parent=55 // pred_region
          %416 = dma.done %s409, 64
        $region68: #{tpu_custom_call.1} parent=55 // pred_fallthru
          _
        // Predicated region
        $region69: #{tpu_custom_call.1} parent=55 // pred_check
          %p417 = pneg %p138
        $region70: #{tpu_custom_call.1} parent=55 // pred_check_branch
          %419 = sbr.rel (%p417) target = $region72
        $region71: #{tpu_custom_call.1} parent=55 // pred_region
          %420 = dma.done [#allocation10], 256
        $region72: #{tpu_custom_call.1} parent=55 // pred_fallthru
          _
        // Predicated region
        $region73: #{tpu_custom_call.1} parent=55 // pred_check
          %p421 = pneg %p222
        $region74: #{tpu_custom_call.1} parent=55 // pred_check_branch
          %423 = sbr.rel (%p421) target = $region76
        $region75: #{tpu_custom_call.1} parent=55 // pred_region
          %424 = dma.done [#allocation10], 256
        $region76: #{tpu_custom_call.1} parent=55 // pred_fallthru
          _
        %s425 = sand.u32 %s52, 1
        %s426 = scalar_lea.sflag [#allocation4], %s425
        %s427 = sand.u32 %s52, 1
        %s428 = smul.addr %s427, 4
        %s429 = scalar_lea.vmem [#allocation3], %s428
        %p430 = pneg %p65
        %p431 = pneg %p62
        %s432 = sand.u32 %s30, 1
        %s433 = scalar_lea.sflag [#allocation7], %s432
        %s434 = sand.u32 %s78, 1
        %s435 = smul.addr %s434, 4
        %s436 = scalar_lea.vmem [#allocation6], %s435
        %p437 = pneg %p91
        %p438 = pneg %p88
        %s439 = sand.u32 %s30, 1
        %s440 = scalar_lea.sflag [#allocation7], %s439
        %s441 = sand.u32 %s104, 1
        %s442 = smul.addr %s441, 4
        %s443 = scalar_lea.vmem [#allocation8], %s442
        %p444 = pneg %p117
        %p445 = pneg %p114
        %p446 = pneg %p138
        %p447 = pneg %p135
        %p448 = pneg %p159
        %p449 = pneg %p156
        %p450 = pneg %p180
        %p451 = pneg %p177
        %p452 = pneg %p201
        %p453 = pneg %p198
        %p454 = pneg %p222
        %p455 = pneg %p219
        %p456 = pneg %p243
        %p457 = pneg %p240
        %p458 = pneg %p271
        %p459 = pneg %p268
        %s460 = sand.u32 %s258, 1
        %s461 = scalar_lea.sflag [#allocation5], %s460
        %s462 = sand.u32 %s258, 1
        %s463 = smul.addr %s462, 8
        %s464 = scalar_lea.vmem [#allocation12], %s463
        %v466 = vld [vmem:[%s394] sm:$0xf]
        %v467 = vld [vmem:[#allocation9] sm:$0xf]
        %v468 = vld [vmem:[#allocation9 + $0x4] sm:$0xf]
        %v469 = vld [vmem:[#allocation9 + $0x8] sm:$0xf]
        %v470 = vld [vmem:[#allocation9 + $0xc] sm:$0xf]
        %v471 = vld [vmem:[%s4] sm:$0x1]
        %v473 = vlaneseq
        %v474 = vshrl.u32 %v473, 7
        %v475 = vsub.s32 0, %v474
        %v476 = vrot.slane %v471, %v475
        %v482 = vunpack.c.l.b16 %v467
        %v483 = vunpack.c.l.b16 %v468
        %v484 = vunpack.c.l.b16 %v469
        %v485 = vunpack.c.l.b16 %v470
        %v486 = vpack.c.b16 %v483, %v482
        %v487 = vpack.c.b16 %v485, %v484
        %vm490 = vcmask 261120
        %v492 = vsel %vm490, %v466, 0
        %494 = vmatprep.subr.bf16.mxu0 0
        %495 = vmatpush1.bf16.msra.mxu0 %v486
        %496 = vmatprep.subr.bf16.mxu0 0
        %497 = vmatpush1.bf16.msra.mxu0 %v487
        %498 = vmatprep.subr.bf16.mxu0 0
        %499 = vmatpush1.bf16.msra.mxu0 0
        %500 = vmatprep.subr.bf16.mxu0 0
        %501 = vmatpush1.bf16.msra.mxu0 0
        %502 = vmatprep.subr.bf16.mxu0 0
        %503 = vmatpush1.bf16.msra.mxu0 0
        %504 = vmatprep.subr.bf16.mxu0 0
        %505 = vmatpush1.bf16.msra.mxu0 0
        %506 = vmatprep.subr.bf16.mxu0 0
        %507 = vmatpush1.bf16.msra.mxu0 0
        %508 = vmatprep.subr.bf16.mxu0 0
        %509 = vmatpush1.bf16.msra.mxu0 0
        %510 = vmatprep.subr.bf16.mxu0 0
        %511 = vmatpush1.bf16.msra.mxu0 0
        %512 = vmatprep.subr.bf16.mxu0 0
        %513 = vmatpush1.bf16.msra.mxu0 0
        %514 = vmatprep.subr.bf16.mxu0 0
        %515 = vmatpush1.bf16.msra.mxu0 0
        %516 = vmatprep.subr.bf16.mxu0 0
        %517 = vmatpush1.bf16.msra.mxu0 0
        %518 = vmatprep.subr.bf16.mxu0 0
        %519 = vmatpush1.bf16.msra.mxu0 0
        %520 = vmatprep.subr.bf16.mxu0 0
        %521 = vmatpush1.bf16.msra.mxu0 0
        %522 = vmatprep.subr.bf16.mxu0 0
        %523 = vmatpush1.bf16.msra.mxu0 0
        %524 = vmatprep.subr.bf16.mxu0 0
        %525 = vmatpush1.bf16.msra.mxu0 0
        %526 = vmatprep.mubr.bf16.mxu0 0
        %527 = vmatmul.mubr.bf16.gmra.mrb[0].mxu0 %v492
        %v528 = vpop.f32.mrb[0].mxu0
        %v529 = vadd.f32 %v476, %v528
        %v530 = vpop.f32.mrb[0].mxu0
        %v531 = vpop.f32.mrb[0].mxu0
        %v532 = vpop.f32.mrb[0].mxu0
        %533 = vdwg.mxu0
        %v534 = vmul.f32 %v529, 0.35355338
        %v535 = vld [vmem:[%s403] sm:$0xf]
        %v536 = vld [vmem:[%s5] sm:$0xf]
        %v537 = vld [vmem:[%s5 + $0x4] sm:$0xf]
        %v538 = vld [vmem:[%s5 + $0x8] sm:$0xf]
        %v539 = vld [vmem:[%s5 + $0xc] sm:$0xf]
        %v540 = vld [vmem:[%s6] sm:$0x1]
        %v542 = vlaneseq
        %v543 = vshrl.u32 %v542, 7
        %v544 = vsub.s32 0, %v543
        %v545 = vrot.slane %v540, %v544
        %v551 = vunpack.c.l.b16 %v536
        %v552 = vunpack.c.l.b16 %v537
        %v553 = vunpack.c.l.b16 %v538
        %v554 = vunpack.c.l.b16 %v539
        %v555 = vpack.c.b16 %v552, %v551
        %v556 = vpack.c.b16 %v554, %v553
        %v560 = vsel %vm490, %v535, 0
        %562 = vmatprep.subr.bf16.mxu0 0
        %563 = vmatpush1.bf16.msra.mxu0 %v555
        %564 = vmatprep.subr.bf16.mxu0 0
        %565 = vmatpush1.bf16.msra.mxu0 %v556
        %566 = vmatprep.subr.bf16.mxu0 0
        %567 = vmatpush1.bf16.msra.mxu0 0
        %568 = vmatprep.subr.bf16.mxu0 0
        %569 = vmatpush1.bf16.msra.mxu0 0
        %570 = vmatprep.subr.bf16.mxu0 0
        %571 = vmatpush1.bf16.msra.mxu0 0
        %572 = vmatprep.subr.bf16.mxu0 0
        %573 = vmatpush1.bf16.msra.mxu0 0
        %574 = vmatprep.subr.bf16.mxu0 0
        %575 = vmatpush1.bf16.msra.mxu0 0
        %576 = vmatprep.subr.bf16.mxu0 0
        %577 = vmatpush1.bf16.msra.mxu0 0
        %578 = vmatprep.subr.bf16.mxu0 0
        %579 = vmatpush1.bf16.msra.mxu0 0
        %580 = vmatprep.subr.bf16.mxu0 0
        %581 = vmatpush1.bf16.msra.mxu0 0
        %582 = vmatprep.subr.bf16.mxu0 0
        %583 = vmatpush1.bf16.msra.mxu0 0
        %584 = vmatprep.subr.bf16.mxu0 0
        %585 = vmatpush1.bf16.msra.mxu0 0
        %586 = vmatprep.subr.bf16.mxu0 0
        %587 = vmatpush1.bf16.msra.mxu0 0
        %588 = vmatprep.subr.bf16.mxu0 0
        %589 = vmatpush1.bf16.msra.mxu0 0
        %590 = vmatprep.subr.bf16.mxu0 0
        %591 = vmatpush1.bf16.msra.mxu0 0
        %592 = vmatprep.subr.bf16.mxu0 0
        %593 = vmatpush1.bf16.msra.mxu0 0
        %594 = vmatprep.mubr.bf16.mxu0 0
        %595 = vmatmul.mubr.bf16.gmra.mrb[0].mxu0 %v560
        %v596 = vpop.f32.mrb[0].mxu0
        %v597 = vadd.f32 %v545, %v596
        %v598 = vpop.f32.mrb[0].mxu0
        %v599 = vpop.f32.mrb[0].mxu0
        %v600 = vpop.f32.mrb[0].mxu0
        %601 = vdwg.mxu0
        %v602 = vld [vmem:[%s412] sm:$0xf]
        %v604 = vsel %vm490, %v602, 0
        %606 = vmatprep.subr.bf16.mxu0 0
        %607 = vmatpush1.bf16.msra.mxu0 %v555
        %608 = vmatprep.subr.bf16.mxu0 0
        %609 = vmatpush1.bf16.msra.mxu0 %v556
        %610 = vmatprep.subr.bf16.mxu0 0
        %611 = vmatpush1.bf16.msra.mxu0 0
        %612 = vmatprep.subr.bf16.mxu0 0
        %613 = vmatpush1.bf16.msra.mxu0 0
        %614 = vmatprep.subr.bf16.mxu0 0
        %615 = vmatpush1.bf16.msra.mxu0 0
        %616 = vmatprep.subr.bf16.mxu0 0
        %617 = vmatpush1.bf16.msra.mxu0 0
        %618 = vmatprep.subr.bf16.mxu0 0
        %619 = vmatpush1.bf16.msra.mxu0 0
        %620 = vmatprep.subr.bf16.mxu0 0
        %621 = vmatpush1.bf16.msra.mxu0 0
        %622 = vmatprep.subr.bf16.mxu0 0
        %623 = vmatpush1.bf16.msra.mxu0 0
        %624 = vmatprep.subr.bf16.mxu0 0
        %625 = vmatpush1.bf16.msra.mxu0 0
        %626 = vmatprep.subr.bf16.mxu0 0
        %627 = vmatpush1.bf16.msra.mxu0 0
        %628 = vmatprep.subr.bf16.mxu0 0
        %629 = vmatpush1.bf16.msra.mxu0 0
        %630 = vmatprep.subr.bf16.mxu0 0
        %631 = vmatpush1.bf16.msra.mxu0 0
        %632 = vmatprep.subr.bf16.mxu0 0
        %633 = vmatpush1.bf16.msra.mxu0 0
        %634 = vmatprep.subr.bf16.mxu0 0
        %635 = vmatpush1.bf16.msra.mxu0 0
        %636 = vmatprep.subr.bf16.mxu0 0
        %637 = vmatpush1.bf16.msra.mxu0 0
        %638 = vmatprep.mubr.bf16.mxu0 0
        %639 = vmatmul.mubr.bf16.gmra.mrb[0].mxu0 %v604
        %v640 = vpop.f32.mrb[0].mxu0
        %v641 = vadd.f32 %v545, %v640
        %v642 = vpop.f32.mrb[0].mxu0
        %v643 = vpop.f32.mrb[0].mxu0
        %v644 = vpop.f32.mrb[0].mxu0
        %645 = vdwg.mxu0
        %v646 = vpack.c.bf16 %v534, %v534
        %v647 = vpack.c.bf16 %v597, %v597
        %v648 = vpack.c.bf16 %v641, %v641
        %vm649 = vcmask 64512
        %v651 = vsel %vm649, %v646, 0
        %v654 = vsel %vm649, %v647, 0
        %656 = vmatprep.subr.bf16.mxu0 0
        %657 = vmatpush1.bf16.xpose.msra.mxu0 %v654
        %658 = vmatprep.subr.bf16.mxu0 0
        %659 = vmatpush1.bf16.xpose.msra.mxu0 0
        %660 = vmatprep.subr.bf16.mxu0 0
        %661 = vmatpush1.bf16.xpose.msra.mxu0 0
        %662 = vmatprep.subr.bf16.mxu0 0
        %663 = vmatpush1.bf16.xpose.msra.mxu0 0
        %664 = vmatprep.subr.bf16.mxu0 0
        %665 = vmatpush1.bf16.xpose.msra.mxu0 0
        %666 = vmatprep.subr.bf16.mxu0 0
        %667 = vmatpush1.bf16.xpose.msra.mxu0 0
        %668 = vmatprep.subr.bf16.mxu0 0
        %669 = vmatpush1.bf16.xpose.msra.mxu0 0
        %670 = vmatprep.subr.bf16.mxu0 0
        %671 = vmatpush1.bf16.xpose.msra.mxu0 0
        %672 = vmatprep.subr.bf16.mxu0 0
        %673 = vmatpush1.bf16.xpose.msra.mxu0 0
        %674 = vmatprep.subr.bf16.mxu0 0
        %675 = vmatpush1.bf16.xpose.msra.mxu0 0
        %676 = vmatprep.subr.bf16.mxu0 0
        %677 = vmatpush1.bf16.xpose.msra.mxu0 0
        %678 = vmatprep.subr.bf16.mxu0 0
        %679 = vmatpush1.bf16.xpose.msra.mxu0 0
        %680 = vmatprep.subr.bf16.mxu0 0
        %681 = vmatpush1.bf16.xpose.msra.mxu0 0
        %682 = vmatprep.subr.bf16.mxu0 0
        %683 = vmatpush1.bf16.xpose.msra.mxu0 0
        %684 = vmatprep.subr.bf16.mxu0 0
        %685 = vmatpush1.bf16.xpose.msra.mxu0 0
        %686 = vmatprep.subr.bf16.mxu0 0
        %687 = vmatpush1.bf16.xpose.msra.mxu0 0
        %688 = vmatprep.mubr.bf16.mxu0 0
        %689 = vmatmul.mubr.bf16.gmra.mrb[0].mxu0 %v651
        %v690 = vpop.f32.mrb[0].mxu0
        %v691 = vadd.f32 0.0, %v690
        %v692 = vpop.f32.mrb[0].mxu0
        %v693 = vpop.f32.mrb[0].mxu0
        %v694 = vpop.f32.mrb[0].mxu0
        %695 = vdwg.mxu0
        %v696 = vsel %vm649, %v691, -inf
        %697 = vmax.xlane.f32.xlu0 %v696
        %v698 = vpop.xlane.xlu0 %697
        %v699 = vsub.f32 %v691, %v698
        %v700 = vmul.f32 %v699, 1.442695
        %v701 = vpow.pop %v700
        %v702 = vsel %vm649, %v701, 0.0
        %703 = vadd.xlane.f32.xlu0 %v702
        %v704 = vpop.xlane.xlu0 %703
        %v705 = vpack.c.bf16 %v701, %v701
        %v707 = vsel %vm649, %v705, 0
        %vm709 = vcmask 1043456
        %v711 = vsel %vm709, %v648, 0
        %713 = vmatprep.subr.bf16.mxu0 0
        %714 = vmatpush1.bf16.msra.mxu0 %v711
        %715 = vmatprep.subr.bf16.mxu0 0
        %716 = vmatpush1.bf16.msra.mxu0 0
        %717 = vmatprep.subr.bf16.mxu0 0
        %718 = vmatpush1.bf16.msra.mxu0 0
        %719 = vmatprep.subr.bf16.mxu0 0
        %720 = vmatpush1.bf16.msra.mxu0 0
        %721 = vmatprep.subr.bf16.mxu0 0
        %722 = vmatpush1.bf16.msra.mxu0 0
        %723 = vmatprep.subr.bf16.mxu0 0
        %724 = vmatpush1.bf16.msra.mxu0 0
        %725 = vmatprep.subr.bf16.mxu0 0
        %726 = vmatpush1.bf16.msra.mxu0 0
        %727 = vmatprep.subr.bf16.mxu0 0
        %728 = vmatpush1.bf16.msra.mxu0 0
        %729 = vmatprep.subr.bf16.mxu0 0
        %730 = vmatpush1.bf16.msra.mxu0 0
        %731 = vmatprep.subr.bf16.mxu0 0
        %732 = vmatpush1.bf16.msra.mxu0 0
        %733 = vmatprep.subr.bf16.mxu0 0
        %734 = vmatpush1.bf16.msra.mxu0 0
        %735 = vmatprep.subr.bf16.mxu0 0
        %736 = vmatpush1.bf16.msra.mxu0 0
        %737 = vmatprep.subr.bf16.mxu0 0
        %738 = vmatpush1.bf16.msra.mxu0 0
        %739 = vmatprep.subr.bf16.mxu0 0
        %740 = vmatpush1.bf16.msra.mxu0 0
        %741 = vmatprep.subr.bf16.mxu0 0
        %742 = vmatpush1.bf16.msra.mxu0 0
        %743 = vmatprep.subr.bf16.mxu0 0
        %744 = vmatpush1.bf16.msra.mxu0 0
        %745 = vmatprep.mubr.bf16.mxu0 0
        %746 = vmatmul.mubr.bf16.gmra.mrb[0].mxu0 %v707
        %v747 = vpop.f32.mrb[0].mxu0
        %v748 = vadd.f32 0.0, %v747
        %v749 = vpop.f32.mrb[0].mxu0
        %v750 = vpop.f32.mrb[0].mxu0
        %v751 = vpop.f32.mrb[0].mxu0
        %752 = vdwg.mxu0
        %v753 = vrcp.pop %v704
        %v754 = vmul.f32 %v748, %v753
        %755 = vst.msk [vmem:[#allocation2] sm:$0xff] %vm649, %v754
        %757 = vrot.lane.b32.xlu0 %v646, 120
        %v758 = vpop.permute.xlu0 %757
        %760 = vrot.lane.b32.xlu0 %v647, 120
        %v761 = vpop.permute.xlu0 %760
        %v763 = vsel %vm649, %v758, 0
        %v766 = vsel %vm649, %v761, 0
        %768 = vmatprep.subr.bf16.mxu0 0
        %769 = vmatpush1.bf16.xpose.msra.mxu0 %v766
        %770 = vmatprep.subr.bf16.mxu0 0
        %771 = vmatpush1.bf16.xpose.msra.mxu0 0
        %772 = vmatprep.subr.bf16.mxu0 0
        %773 = vmatpush1.bf16.xpose.msra.mxu0 0
        %774 = vmatprep.subr.bf16.mxu0 0
        %775 = vmatpush1.bf16.xpose.msra.mxu0 0
        %776 = vmatprep.subr.bf16.mxu0 0
        %777 = vmatpush1.bf16.xpose.msra.mxu0 0
        %778 = vmatprep.subr.bf16.mxu0 0
        %779 = vmatpush1.bf16.xpose.msra.mxu0 0
        %780 = vmatprep.subr.bf16.mxu0 0
        %781 = vmatpush1.bf16.xpose.msra.mxu0 0
        %782 = vmatprep.subr.bf16.mxu0 0
        %783 = vmatpush1.bf16.xpose.msra.mxu0 0
        %784 = vmatprep.subr.bf16.mxu0 0
        %785 = vmatpush1.bf16.xpose.msra.mxu0 0
        %786 = vmatprep.subr.bf16.mxu0 0
        %787 = vmatpush1.bf16.xpose.msra.mxu0 0
        %788 = vmatprep.subr.bf16.mxu0 0
        %789 = vmatpush1.bf16.xpose.msra.mxu0 0
        %790 = vmatprep.subr.bf16.mxu0 0
        %791 = vmatpush1.bf16.xpose.msra.mxu0 0
        %792 = vmatprep.subr.bf16.mxu0 0
        %793 = vmatpush1.bf16.xpose.msra.mxu0 0
        %794 = vmatprep.subr.bf16.mxu0 0
        %795 = vmatpush1.bf16.xpose.msra.mxu0 0
        %796 = vmatprep.subr.bf16.mxu0 0
        %797 = vmatpush1.bf16.xpose.msra.mxu0 0
        %798 = vmatprep.subr.bf16.mxu0 0
        %799 = vmatpush1.bf16.xpose.msra.mxu0 0
        %800 = vmatprep.mubr.bf16.mxu0 0
        %801 = vmatmul.mubr.bf16.gmra.mrb[0].mxu0 %v763
        %v802 = vpop.f32.mrb[0].mxu0
        %v803 = vadd.f32 0.0, %v802
        %v804 = vpop.f32.mrb[0].mxu0
        %v805 = vpop.f32.mrb[0].mxu0
        %v806 = vpop.f32.mrb[0].mxu0
        %807 = vdwg.mxu0
        %v808 = vsel %vm649, %v803, -inf
        %809 = vmax.xlane.f32.xlu0 %v808
        %v810 = vpop.xlane.xlu0 %809
        %v811 = vsub.f32 %v803, %v810
        %v812 = vmul.f32 %v811, 1.442695
        %v813 = vpow.pop %v812
        %v814 = vsel %vm649, %v813, 0.0
        %815 = vadd.xlane.f32.xlu0 %v814
        %v816 = vpop.xlane.xlu0 %815
        %v817 = vpack.c.bf16 %v813, %v813
        %819 = vrot.lane.b32.xlu0 %v648, 120
        %v820 = vpop.permute.xlu0 %819
        %v822 = vsel %vm649, %v817, 0
        %v825 = vsel %vm709, %v820, 0
        %827 = vmatprep.subr.bf16.mxu0 0
        %828 = vmatpush1.bf16.msra.mxu0 %v825
        %829 = vmatprep.subr.bf16.mxu0 0
        %830 = vmatpush1.bf16.msra.mxu0 0
        %831 = vmatprep.subr.bf16.mxu0 0
        %832 = vmatpush1.bf16.msra.mxu0 0
        %833 = vmatprep.subr.bf16.mxu0 0
        %834 = vmatpush1.bf16.msra.mxu0 0
        %835 = vmatprep.subr.bf16.mxu0 0
        %836 = vmatpush1.bf16.msra.mxu0 0
        %837 = vmatprep.subr.bf16.mxu0 0
        %838 = vmatpush1.bf16.msra.mxu0 0
        %839 = vmatprep.subr.bf16.mxu0 0
        %840 = vmatpush1.bf16.msra.mxu0 0
        %841 = vmatprep.subr.bf16.mxu0 0
        %842 = vmatpush1.bf16.msra.mxu0 0
        %843 = vmatprep.subr.bf16.mxu0 0
        %844 = vmatpush1.bf16.msra.mxu0 0
        %845 = vmatprep.subr.bf16.mxu0 0
        %846 = vmatpush1.bf16.msra.mxu0 0
        %847 = vmatprep.subr.bf16.mxu0 0
        %848 = vmatpush1.bf16.msra.mxu0 0
        %849 = vmatprep.subr.bf16.mxu0 0
        %850 = vmatpush1.bf16.msra.mxu0 0
        %851 = vmatprep.subr.bf16.mxu0 0
        %852 = vmatpush1.bf16.msra.mxu0 0
        %853 = vmatprep.subr.bf16.mxu0 0
        %854 = vmatpush1.bf16.msra.mxu0 0
        %855 = vmatprep.subr.bf16.mxu0 0
        %856 = vmatpush1.bf16.msra.mxu0 0
        %857 = vmatprep.subr.bf16.mxu0 0
        %858 = vmatpush1.bf16.msra.mxu0 0
        %859 = vmatprep.mubr.bf16.mxu0 0
        %860 = vmatmul.mubr.bf16.gmra.mrb[0].mxu0 %v822
        %v861 = vpop.f32.mrb[0].mxu0
        %v862 = vadd.f32 0.0, %v861
        %v863 = vpop.f32.mrb[0].mxu0
        %v864 = vpop.f32.mrb[0].mxu0
        %v865 = vpop.f32.mrb[0].mxu0
        %866 = vdwg.mxu0
        %v867 = vrcp.pop %v816
        %v868 = vmul.f32 %v862, %v867
        %870 = vrot.lane.b32.xlu0 %v868, 8
        %v871 = vpop.permute.xlu0 %870
        %vm873 = vcmask 130112
        %874 = vst.msk [vmem:[#allocation2] sm:$0xff] %vm873, %v871
        %875 = vrot.lane.b32.xlu0 %v646, 112
        %v876 = vpop.permute.xlu0 %875
        %877 = vrot.lane.b32.xlu0 %v647, 112
        %v878 = vpop.permute.xlu0 %877
        %v880 = vsel %vm649, %v876, 0
        %v883 = vsel %vm649, %v878, 0
        %885 = vmatprep.subr.bf16.mxu0 0
        %886 = vmatpush1.bf16.xpose.msra.mxu0 %v883
        %887 = vmatprep.subr.bf16.mxu0 0
        %888 = vmatpush1.bf16.xpose.msra.mxu0 0
        %889 = vmatprep.subr.bf16.mxu0 0
        %890 = vmatpush1.bf16.xpose.msra.mxu0 0
        %891 = vmatprep.subr.bf16.mxu0 0
        %892 = vmatpush1.bf16.xpose.msra.mxu0 0
        %893 = vmatprep.subr.bf16.mxu0 0
        %894 = vmatpush1.bf16.xpose.msra.mxu0 0
        %895 = vmatprep.subr.bf16.mxu0 0
        %896 = vmatpush1.bf16.xpose.msra.mxu0 0
        %897 = vmatprep.subr.bf16.mxu0 0
        %898 = vmatpush1.bf16.xpose.msra.mxu0 0
        %899 = vmatprep.subr.bf16.mxu0 0
        %900 = vmatpush1.bf16.xpose.msra.mxu0 0
        %901 = vmatprep.subr.bf16.mxu0 0
        %902 = vmatpush1.bf16.xpose.msra.mxu0 0
        %903 = vmatprep.subr.bf16.mxu0 0
        %904 = vmatpush1.bf16.xpose.msra.mxu0 0
        %905 = vmatprep.subr.bf16.mxu0 0
        %906 = vmatpush1.bf16.xpose.msra.mxu0 0
        %907 = vmatprep.subr.bf16.mxu0 0
        %908 = vmatpush1.bf16.xpose.msra.mxu0 0
        %909 = vmatprep.subr.bf16.mxu0 0
        %910 = vmatpush1.bf16.xpose.msra.mxu0 0
        %911 = vmatprep.subr.bf16.mxu0 0
        %912 = vmatpush1.bf16.xpose.msra.mxu0 0
        %913 = vmatprep.subr.bf16.mxu0 0
        %914 = vmatpush1.bf16.xpose.msra.mxu0 0
        %915 = vmatprep.subr.bf16.mxu0 0
        %916 = vmatpush1.bf16.xpose.msra.mxu0 0
        %917 = vmatprep.mubr.bf16.mxu0 0
        %918 = vmatmul.mubr.bf16.gmra.mrb[0].mxu0 %v880
        %v919 = vpop.f32.mrb[0].mxu0
        %v920 = vadd.f32 0.0, %v919
        %v921 = vpop.f32.mrb[0].mxu0
        %v922 = vpop.f32.mrb[0].mxu0
        %v923 = vpop.f32.mrb[0].mxu0
        %924 = vdwg.mxu0
        %v925 = vsel %vm649, %v920, -inf
        %926 = vmax.xlane.f32.xlu0 %v925
        %v927 = vpop.xlane.xlu0 %926
        %v928 = vsub.f32 %v920, %v927
        %v929 = vmul.f32 %v928, 1.442695
        %v930 = vpow.pop %v929
        %v931 = vsel %vm649, %v930, 0.0
        %932 = vadd.xlane.f32.xlu0 %v931
        %v933 = vpop.xlane.xlu0 %932
        %v934 = vpack.c.bf16 %v930, %v930
        %935 = vrot.lane.b32.xlu0 %v648, 112
        %v936 = vpop.permute.xlu0 %935
        %v938 = vsel %vm649, %v934, 0
        %v941 = vsel %vm709, %v936, 0
        %943 = vmatprep.subr.bf16.mxu0 0
        %944 = vmatpush1.bf16.msra.mxu0 %v941
        %945 = vmatprep.subr.bf16.mxu0 0
        %946 = vmatpush1.bf16.msra.mxu0 0
        %947 = vmatprep.subr.bf16.mxu0 0
        %948 = vmatpush1.bf16.msra.mxu0 0
        %949 = vmatprep.subr.bf16.mxu0 0
        %950 = vmatpush1.bf16.msra.mxu0 0
        %951 = vmatprep.subr.bf16.mxu0 0
        %952 = vmatpush1.bf16.msra.mxu0 0
        %953 = vmatprep.subr.bf16.mxu0 0
        %954 = vmatpush1.bf16.msra.mxu0 0
        %955 = vmatprep.subr.bf16.mxu0 0
        %956 = vmatpush1.bf16.msra.mxu0 0
        %957 = vmatprep.subr.bf16.mxu0 0
        %958 = vmatpush1.bf16.msra.mxu0 0
        %959 = vmatprep.subr.bf16.mxu0 0
        %960 = vmatpush1.bf16.msra.mxu0 0
        %961 = vmatprep.subr.bf16.mxu0 0
        %962 = vmatpush1.bf16.msra.mxu0 0
        %963 = vmatprep.subr.bf16.mxu0 0
        %964 = vmatpush1.bf16.msra.mxu0 0
        %965 = vmatprep.subr.bf16.mxu0 0
        %966 = vmatpush1.bf16.msra.mxu0 0
        %967 = vmatprep.subr.bf16.mxu0 0
        %968 = vmatpush1.bf16.msra.mxu0 0
        %969 = vmatprep.subr.bf16.mxu0 0
        %970 = vmatpush1.bf16.msra.mxu0 0
        %971 = vmatprep.subr.bf16.mxu0 0
        %972 = vmatpush1.bf16.msra.mxu0 0
        %973 = vmatprep.subr.bf16.mxu0 0
        %974 = vmatpush1.bf16.msra.mxu0 0
        %975 = vmatprep.mubr.bf16.mxu0 0
        %976 = vmatmul.mubr.bf16.gmra.mrb[0].mxu0 %v938
        %v977 = vpop.f32.mrb[0].mxu0
        %v978 = vadd.f32 0.0, %v977
        %v979 = vpop.f32.mrb[0].mxu0
        %v980 = vpop.f32.mrb[0].mxu0
        %v981 = vpop.f32.mrb[0].mxu0
        %982 = vdwg.mxu0
        %v983 = vrcp.pop %v933
        %v984 = vmul.f32 %v978, %v983
        %986 = vrot.lane.b32.xlu0 %v984, 16
        %v987 = vpop.permute.xlu0 %986
        %vm989 = vcmask 195712
        %990 = vst.msk [vmem:[#allocation2] sm:$0xff] %vm989, %v987
        %991 = vrot.lane.b32.xlu0 %v646, 104
        %v992 = vpop.permute.xlu0 %991
        %993 = vrot.lane.b32.xlu0 %v647, 104
        %v994 = vpop.permute.xlu0 %993
        %v996 = vsel %vm649, %v992, 0
        %v999 = vsel %vm649, %v994, 0
        %1001 = vmatprep.subr.bf16.mxu0 0
        %1002 = vmatpush1.bf16.xpose.msra.mxu0 %v999
        %1003 = vmatprep.subr.bf16.mxu0 0
        %1004 = vmatpush1.bf16.xpose.msra.mxu0 0
        %1005 = vmatprep.subr.bf16.mxu0 0
        %1006 = vmatpush1.bf16.xpose.msra.mxu0 0
        %1007 = vmatprep.subr.bf16.mxu0 0
        %1008 = vmatpush1.bf16.xpose.msra.mxu0 0
        %1009 = vmatprep.subr.bf16.mxu0 0
        %1010 = vmatpush1.bf16.xpose.msra.mxu0 0
        %1011 = vmatprep.subr.bf16.mxu0 0
        %1012 = vmatpush1.bf16.xpose.msra.mxu0 0
        %1013 = vmatprep.subr.bf16.mxu0 0
        %1014 = vmatpush1.bf16.xpose.msra.mxu0 0
        %1015 = vmatprep.subr.bf16.mxu0 0
        %1016 = vmatpush1.bf16.xpose.msra.mxu0 0
        %1017 = vmatprep.subr.bf16.mxu0 0
        %1018 = vmatpush1.bf16.xpose.msra.mxu0 0
        %1019 = vmatprep.subr.bf16.mxu0 0
        %1020 = vmatpush1.bf16.xpose.msra.mxu0 0
        %1021 = vmatprep.subr.bf16.mxu0 0
        %1022 = vmatpush1.bf16.xpose.msra.mxu0 0
        %1023 = vmatprep.subr.bf16.mxu0 0
        %1024 = vmatpush1.bf16.xpose.msra.mxu0 0
        %1025 = vmatprep.subr.bf16.mxu0 0
        %1026 = vmatpush1.bf16.xpose.msra.mxu0 0
        %1027 = vmatprep.subr.bf16.mxu0 0
        %1028 = vmatpush1.bf16.xpose.msra.mxu0 0
        %1029 = vmatprep.subr.bf16.mxu0 0
        %1030 = vmatpush1.bf16.xpose.msra.mxu0 0
        %1031 = vmatprep.subr.bf16.mxu0 0
        %1032 = vmatpush1.bf16.xpose.msra.mxu0 0
        %1033 = vmatprep.mubr.bf16.mxu0 0
        %1034 = vmatmul.mubr.bf16.gmra.mrb[0].mxu0 %v996
        %v1035 = vpop.f32.mrb[0].mxu0
        %v1036 = vadd.f32 0.0, %v1035
        %v1037 = vpop.f32.mrb[0].mxu0
        %v1038 = vpop.f32.mrb[0].mxu0
        %v1039 = vpop.f32.mrb[0].mxu0
        %1040 = vdwg.mxu0
        %v1041 = vsel %vm649, %v1036, -inf
        %1042 = vmax.xlane.f32.xlu0 %v1041
        %v1043 = vpop.xlane.xlu0 %1042
        %v1044 = vsub.f32 %v1036, %v1043
        %v1045 = vmul.f32 %v1044, 1.442695
        %v1046 = vpow.pop %v1045
        %v1047 = vsel %vm649, %v1046, 0.0
        %1048 = vadd.xlane.f32.xlu0 %v1047
        %v1049 = vpop.xlane.xlu0 %1048
        %v1050 = vpack.c.bf16 %v1046, %v1046
        %1051 = vrot.lane.b32.xlu0 %v648, 104
        %v1052 = vpop.permute.xlu0 %1051
        %v1054 = vsel %vm649, %v1050, 0
        %v1057 = vsel %vm709, %v1052, 0
        %1059 = vmatprep.subr.bf16.mxu0 0
        %1060 = vmatpush1.bf16.msra.mxu0 %v1057
        %1061 = vmatprep.subr.bf16.mxu0 0
        %1062 = vmatpush1.bf16.msra.mxu0 0
        %1063 = vmatprep.subr.bf16.mxu0 0
        %1064 = vmatpush1.bf16.msra.mxu0 0
        %1065 = vmatprep.subr.bf16.mxu0 0
        %1066 = vmatpush1.bf16.msra.mxu0 0
        %1067 = vmatprep.subr.bf16.mxu0 0
        %1068 = vmatpush1.bf16.msra.mxu0 0
        %1069 = vmatprep.subr.bf16.mxu0 0
        %1070 = vmatpush1.bf16.msra.mxu0 0
        %1071 = vmatprep.subr.bf16.mxu0 0
        %1072 = vmatpush1.bf16.msra.mxu0 0
        %1073 = vmatprep.subr.bf16.mxu0 0
        %1074 = vmatpush1.bf16.msra.mxu0 0
        %1075 = vmatprep.subr.bf16.mxu0 0
        %1076 = vmatpush1.bf16.msra.mxu0 0
        %1077 = vmatprep.subr.bf16.mxu0 0
        %1078 = vmatpush1.bf16.msra.mxu0 0
        %1079 = vmatprep.subr.bf16.mxu0 0
        %1080 = vmatpush1.bf16.msra.mxu0 0
        %1081 = vmatprep.subr.bf16.mxu0 0
        %1082 = vmatpush1.bf16.msra.mxu0 0
        %1083 = vmatprep.subr.bf16.mxu0 0
        %1084 = vmatpush1.bf16.msra.mxu0 0
        %1085 = vmatprep.subr.bf16.mxu0 0
        %1086 = vmatpush1.bf16.msra.mxu0 0
        %1087 = vmatprep.subr.bf16.mxu0 0
        %1088 = vmatpush1.bf16.msra.mxu0 0
        %1089 = vmatprep.subr.bf16.mxu0 0
        %1090 = vmatpush1.bf16.msra.mxu0 0
        %1091 = vmatprep.mubr.bf16.mxu0 0
        %1092 = vmatmul.mubr.bf16.gmra.mrb[0].mxu0 %v1054
        %v1093 = vpop.f32.mrb[0].mxu0
        %v1094 = vadd.f32 0.0, %v1093
        %v1095 = vpop.f32.mrb[0].mxu0
        %v1096 = vpop.f32.mrb[0].mxu0
        %v1097 = vpop.f32.mrb[0].mxu0
        %1098 = vdwg.mxu0
        %v1099 = vrcp.pop %v1049
        %v1100 = vmul.f32 %v1094, %v1099
        %1102 = vrot.lane.b32.xlu0 %v1100, 24
        %v1103 = vpop.permute.xlu0 %1102
        %vm1105 = vcmask 261312
        %1106 = vst.msk [vmem:[#allocation2] sm:$0xff] %vm1105, %v1103
        %v1107 = vld [vmem:[#allocation2] sm:$0xff]
        %v1108 = vpack.c.bf16 %v1107, %v1107
        %v1109 = vld [vmem:[#allocation11] sm:$0xf]
        %v1110 = vld [vmem:[#allocation11 + $0x4] sm:$0xf]
        %v1111 = vld [vmem:[#allocation11 + $0x8] sm:$0xf]
        %v1112 = vld [vmem:[#allocation11 + $0xc] sm:$0xf]
        %v1113 = vld [vmem:[%s8] sm:$0x1]
        %v1115 = vlaneseq
        %v1116 = vshrl.u32 %v1115, 7
        %v1117 = vsub.s32 0, %v1116
        %v1118 = vrot.slane %v1113, %v1117
        %v1124 = vunpack.c.l.b16 %v1109
        %v1125 = vunpack.c.l.b16 %v1110
        %v1126 = vunpack.c.l.b16 %v1111
        %v1127 = vunpack.c.l.b16 %v1112
        %v1128 = vpack.c.b16 %v1125, %v1124
        %v1129 = vpack.c.b16 %v1127, %v1126
        %v1133 = vsel %vm490, %v1108, 0
        %1135 = vmatprep.subr.bf16.mxu0 0
        %1136 = vmatpush1.bf16.msra.mxu0 %v1128
        %1137 = vmatprep.subr.bf16.mxu0 0
        %1138 = vmatpush1.bf16.msra.mxu0 %v1129
        %1139 = vmatprep.subr.bf16.mxu0 0
        %1140 = vmatpush1.bf16.msra.mxu0 0
        %1141 = vmatprep.subr.bf16.mxu0 0
        %1142 = vmatpush1.bf16.msra.mxu0 0
        %1143 = vmatprep.subr.bf16.mxu0 0
        %1144 = vmatpush1.bf16.msra.mxu0 0
        %1145 = vmatprep.subr.bf16.mxu0 0
        %1146 = vmatpush1.bf16.msra.mxu0 0
        %1147 = vmatprep.subr.bf16.mxu0 0
        %1148 = vmatpush1.bf16.msra.mxu0 0
        %1149 = vmatprep.subr.bf16.mxu0 0
        %1150 = vmatpush1.bf16.msra.mxu0 0
        %1151 = vmatprep.subr.bf16.mxu0 0
        %1152 = vmatpush1.bf16.msra.mxu0 0
        %1153 = vmatprep.subr.bf16.mxu0 0
        %1154 = vmatpush1.bf16.msra.mxu0 0
        %1155 = vmatprep.subr.bf16.mxu0 0
        %1156 = vmatpush1.bf16.msra.mxu0 0
        %1157 = vmatprep.subr.bf16.mxu0 0
        %1158 = vmatpush1.bf16.msra.mxu0 0
        %1159 = vmatprep.subr.bf16.mxu0 0
        %1160 = vmatpush1.bf16.msra.mxu0 0
        %1161 = vmatprep.subr.bf16.mxu0 0
        %1162 = vmatpush1.bf16.msra.mxu0 0
        %1163 = vmatprep.subr.bf16.mxu0 0
        %1164 = vmatpush1.bf16.msra.mxu0 0
        %1165 = vmatprep.subr.bf16.mxu0 0
        %1166 = vmatpush1.bf16.msra.mxu0 0
        %1167 = vmatprep.mubr.bf16.mxu0 0
        %1168 = vmatmul.mubr.bf16.gmra.mrb[0].mxu0 %v1133
        %v1169 = vpop.f32.mrb[0].mxu0
        %v1170 = vadd.f32 %v1118, %v1169
        %v1171 = vpop.f32.mrb[0].mxu0
        %v1172 = vpop.f32.mrb[0].mxu0
        %v1173 = vpop.f32.mrb[0].mxu0
        %1174 = vdwg.mxu0
        %1175 = vst.msk [vmem:[%s464] sm:$0xff] %vm490, %v1170
        %s1176 = sand.u32 %s258, 1
        %s1177 = scalar_lea.sflag [#allocation5], %s1176
        %s1178 = sand.u32 %s258, 1
        %s1179 = smul.addr %s1178, 8
        %s1180 = scalar_lea.vmem [#allocation12], %s1179
        // Predicated region
        $region77: #{tpu_custom_call.1} parent=55 // pred_check
          %p1181 = pneg %p268
        $region78: #{tpu_custom_call.1} parent=55 // pred_check_branch
          %1183 = sbr.rel (%p1181) target = $region80
        $region79: #{tpu_custom_call.1} parent=55 // pred_region
          %s1185 = ssub.s32 128, 128
          %1186 = vsyncadd %s1177, %s1185
          %s1187 = sadd.s32 %s35, %s34
          %s1188 = smul.addr %s1187, 128
          %s1189 = scalar_lea.hbm %s9, %s1188
          %s1191 = sshll.u32 %s1180, 4
          %s1192 = int_to_ptr.vmem [resolvable:$true] %s1191
          %1194 = dma.vmem_to_hbm [thread:$0]  %s1192, 128, %s1189, %s1177
        $region80: #{tpu_custom_call.1} parent=55 // pred_fallthru
          _
      $region56: #{tpu_custom_call.1} parent=5 // pred_fallthru
        _
      %p1195 = scmp.le.s32.totalorder 2, %s25
      // Predicated region
      $region81: #{tpu_custom_call.1} parent=5 // pred_check
        %p1196 = pneg %p1195
      $region82: #{tpu_custom_call.1} parent=5 // pred_check_branch
        %1198 = sbr.rel (%p1196) target = $region84
      $region83: #{tpu_custom_call.1} parent=5 // pred_region
        %s1199 = ssub.s32 %s25, 2
        // Predicated region
        $region85: #{tpu_custom_call.1} parent=83 // pred_check
          %p1200 = pneg %p274
        $region86: #{tpu_custom_call.1} parent=83 // pred_check_branch
          %1202 = sbr.rel (%p1200) target = $region88
        $region87: #{tpu_custom_call.1} parent=83 // pred_region
          %s1203 = sand.u32 %s259, 1
          %s1204 = scalar_lea.sflag [#allocation5], %s1203
          %s1205 = sand.u32 %s259, 1
          %s1206 = smul.addr %s1205, 8
          %s1207 = scalar_lea.vmem [#allocation12], %s1206
          %1208 = dma.done %s1204, 128
        $region88: #{tpu_custom_call.1} parent=83 // pred_fallthru
          _
      $region84: #{tpu_custom_call.1} parent=5 // pred_fallthru
        _
    $region6: #{tpu_custom_call.1} parent=1 // loop_footer
      %s29 = sadd.s32 1, %s25
    $region7: #{tpu_custom_call.1} parent=1 // loop_footer_branch
      %24 = sbr.rel target = $region3
    $region8: #{tpu_custom_call.1} parent=1 // loop_exit
      _
    %1209 = vsyncpa [#allocation4], 1
    %s1210 = scalar_lea.sflag [#allocation4], 1
    %1211 = vsyncpa %s1210, 1
    %1212 = vsyncpa [#allocation7], 1
    %s1213 = scalar_lea.sflag [#allocation7], 1
    %1214 = vsyncpa %s1213, 1
    %1215 = vsyncpa [#allocation10], 1
    %1216 = vsyncpa [#allocation5], 1
    %s1217 = scalar_lea.sflag [#allocation5], 1
    %1218 = vsyncpa %s1217, 1

</llo_original>
